<compile_context>
chip_gen: v7x
topology: tpu7x:2x2x1
jax: 0.10.0
libtpu: 0.0.40
codegen_flags: <defaults>
</compile_context>

<pallas_src>
import jax
import jax.numpy as jnp
import numpy as np
from jax.experimental import pallas as pl
from jax.experimental.pallas import tpu as pltpu


def _layernorm(x, gamma, beta, eps=1e-5):
    mu = jnp.mean(x, axis=-1, keepdims=True)
    var = jnp.mean((x - mu) ** 2, axis=-1, keepdims=True)
    return (x - mu) * jax.lax.rsqrt(var + eps) * gamma + beta


def hybrid_kernel(hs_ref, mask_ref, gnn_ref,
                  w_llm_ref, w_gnn_ref,
                  w_g1_ref, w_g2_ref,
                  ln_f_g_ref, ln_f_b_ref,
                  w_c1_ref, ln1_g_ref, ln1_b_ref,
                  w_c2_ref, ln2_g_ref, ln2_b_ref,
                  w_c3t_ref, b_c3_ref,
                  out_ref, acc_ref, cnt_ref):
    s = pl.program_id(1)
    ns = pl.num_programs(1)

    # ---- init accumulators for this batch row ----
    @pl.when(s == 0)
    def _init():
        acc_ref[...] = jnp.zeros_like(acc_ref)
        cnt_ref[...] = jnp.zeros_like(cnt_ref)

    # ---- masked partial sum over this sequence tile ----
    # mask is exactly 0/1 in bf16; the weighted sum is a [1, s_tile] @ [s_tile, H]
    # bf16 MXU matvec accumulated in f32.  The mask count (pooling denominator)
    # is accumulated alongside so no extra HBM operand is needed.
    mrow = mask_ref[0]                                            # [1, s_tile] bf16
    acc_ref[...] += jnp.dot(mrow, hs_ref[0],                      # hs_ref[0]: [s_tile, H] bf16
                            preferred_element_type=jnp.float32)
    cnt_ref[...] += jnp.sum(mrow.astype(jnp.float32), axis=-1, keepdims=True)

    # ---- epilogue: gate fusion + classifier head (once per batch row) ----
    @pl.when(s == ns - 1)
    def _epilogue():
        inv = 1.0 / jnp.maximum(cnt_ref[...], 1e-9)               # [1, 1]
        llm_emb = acc_ref[...] * inv                               # [1, H] f32
        gnn = gnn_ref[0]                                           # [1, G] f32

        llm_proj = jnp.dot(llm_emb.astype(jnp.bfloat16), w_llm_ref[...],
                           preferred_element_type=jnp.float32)     # [1, F]
        gnn_proj = jnp.dot(gnn.astype(jnp.bfloat16), w_gnn_ref[...],
                           preferred_element_type=jnp.float32)     # [1, F]

        F = llm_proj.shape[-1]
        w_g1 = w_g1_ref[...]                                       # [2F, F//2] bf16
        # concat([llm_proj, gnn_proj]) @ w_g1 == llm_proj @ w_g1[:F] + gnn_proj @ w_g1[F:]
        gate_h = (jnp.dot(llm_proj.astype(jnp.bfloat16), w_g1[:F, :],
                          preferred_element_type=jnp.float32)
                  + jnp.dot(gnn_proj.astype(jnp.bfloat16), w_g1[F:, :],
                            preferred_element_type=jnp.float32))
        gate_h = jnp.maximum(gate_h, 0.0)                          # ReLU (dropout = identity)
        # second gate linear (output width 1) as a lane reduction (XLU)
        gate_logit = jnp.sum(gate_h * w_g2_ref[...], axis=-1, keepdims=True)  # [1, 1]
        g = jax.nn.sigmoid(gate_logit)

        fused = g * llm_proj + (1.0 - g) * gnn_proj
        fused = _layernorm(fused, ln_f_g_ref[...], ln_f_b_ref[...])           # [1, F]

        h1 = jnp.dot(fused.astype(jnp.bfloat16), w_c1_ref[...],
                     preferred_element_type=jnp.float32)
        h1 = jnp.maximum(_layernorm(h1, ln1_g_ref[...], ln1_b_ref[...]), 0.0)
        h2 = jnp.dot(h1.astype(jnp.bfloat16), w_c2_ref[...],
                     preferred_element_type=jnp.float32)
        h2 = jnp.maximum(_layernorm(h2, ln2_g_ref[...], ln2_b_ref[...]), 0.0)  # [1, half]

        # final 2-wide classifier in f32 as VPU multiplies + lane reductions
        # (avoids an f32 MXU push with only 2 output lanes).
        wc = w_c3t_ref[...]                                        # [2, half] f32
        logit0 = jnp.sum(h2 * wc[0:1, :], axis=-1, keepdims=True)  # [1, 1]
        logit1 = jnp.sum(h2 * wc[1:2, :], axis=-1, keepdims=True)  # [1, 1]
        lane = jax.lax.broadcasted_iota(jnp.int32, (1, 2), 1)
        logits = b_c3_ref[...] + jnp.where(lane == 0, logit0, logit1)          # [1, 2]
        out_ref[0] = logits


# ---------------------------------------------------------------------------
# Wrapper: per-generation tiling / VMEM defaults.
# ---------------------------------------------------------------------------
_GEN_DEFAULTS = {
    # s_tile target, vmem_limit_bytes, hidden pipeline depth (None = default 2)
    "v5e": dict(s_tile=512,  vmem=48 * 1024 * 1024, hidden_buffers=None),
    "v6e": dict(s_tile=2048, vmem=96 * 1024 * 1024, hidden_buffers=None),
    "v7x": dict(s_tile=1024, vmem=56 * 1024 * 1024, hidden_buffers=3),
}


def _tpu_generation():
    try:
        kind = jax.devices()[0].device_kind.lower()
    except Exception:
        return "v7x"
    if "v5 lite" in kind or "v5e" in kind or "v5lite" in kind:
        return "v5e"
    if "v2" in kind or "v3" in kind or "v4" in kind:
        return "v5e"           # older chips: conservative small-tile settings
    if "v5" in kind or "v6" in kind:
        return "v6e"           # v5p / v6e: 128 MiB VMEM class
    return "v7x"               # v7x / unknown newer: 64 MiB VMEM budget


def _select_s_tile(S, target):
    """Largest multiple of 128 that divides S and is <= target."""
    best = 0
    t = 128
    limit = min(S, target)
    while t <= limit:
        if S % t == 0:
            best = t
        t += 128
    if best == 0:
        if S % 128 == 0:
            best = 128
        else:
            raise ValueError(f"S={S} must be a multiple of 128")
    return best


def optimized_hybrid_forward(hidden_states, attn_mask, gnn_emb, params, *,
                             s_tile=None, vmem_limit_bytes=None,
                             single_buffer_weights=True, hidden_buffers=None):
    B, S, H = hidden_states.shape
    G = gnn_emb.shape[-1]

    gen = _tpu_generation()
    defaults = _GEN_DEFAULTS[gen]
    if s_tile is None:
        s_tile = _select_s_tile(S, defaults["s_tile"])
    if vmem_limit_bytes is None:
        vmem_limit_bytes = defaults["vmem"]
    if hidden_buffers is None:
        hidden_buffers = defaults["hidden_buffers"]
    assert S % s_tile == 0 and s_tile % 128 == 0, \
        "s_tile must be a multiple of 128 dividing S"
    ns = S // s_tile

    # mask passed as bf16 (exact for 0/1); reshaped to [B,1,S] so per-row blocks
    # satisfy the (8,128)/full-dim block-shape rule.  gnn likewise [B,1,G].
    mask3 = attn_mask.astype(jnp.bfloat16).reshape(B, 1, S)
    gnn3 = gnn_emb.astype(jnp.float32).reshape(B, 1, G)

    weights = (params["w_llm"], params["w_gnn"],
               params["w_g1"], params["w_g2"],
               params["ln_f_g"], params["ln_f_b"],
               params["w_c1"], params["ln1_g"], params["ln1_b"],
               params["w_c2"], params["ln2_g"], params["ln2_b"],
               params["w_c3t"], params["b_c3"])

    F = params["w_llm"].shape[-1]
    half = F // 2
    flops = 2 * B * S * H + 2 * B * (H * F + G * F + 2 * F * half
                                     + F * F + F * half + half * 2)
    bytes_accessed = (hidden_states.size * hidden_states.dtype.itemsize
                      + mask3.size * 2 + gnn3.size * 4
                      + sum(int(np.prod(w.shape)) * w.dtype.itemsize for w in weights)
                      + B * 2 * 4)
    cost = pl.CostEstimate(flops=int(flops), transcendentals=int(8 * B),
                           bytes_accessed=int(bytes_accessed))

    _const = lambda b, s: (0, 0)

    def _pcall(with_pipeline_modes):
        def _wspec(w):
            if with_pipeline_modes and single_buffer_weights:
                # resident (constant index-map) weights: single-buffer to save VMEM
                return pl.BlockSpec(w.shape, _const, pipeline_mode=pl.Buffered(1))
            return pl.BlockSpec(w.shape, _const)

        hs_kwargs = {}
        if with_pipeline_modes and hidden_buffers not in (None, 2):
            hs_kwargs = dict(pipeline_mode=pl.Buffered(int(hidden_buffers)))

        in_specs = [
            pl.BlockSpec((1, s_tile, H), lambda b, s: (b, s, 0), **hs_kwargs),  # streamed
            pl.BlockSpec((1, 1, s_tile), lambda b, s: (b, 0, s)),   # per-row mask strip
            pl.BlockSpec((1, 1, G), lambda b, s: (b, 0, 0)),        # per-row gnn embedding
        ] + [_wspec(w) for w in weights]

        return pl.pallas_call(
            hybrid_kernel,
            out_shape=jax.ShapeDtypeStruct((B, 1, 2), jnp.float32),
            grid_spec=pltpu.PrefetchScalarGridSpec(
                num_scalar_prefetch=0,
                grid=(B, ns),                                       # reduction axis last
                in_specs=in_specs,
                # NOTE: constant along s -> epilogue-only write is legal.
                out_specs=pl.BlockSpec((1, 1, 2), lambda b, s: (b, 0, 0)),
                scratch_shapes=[pltpu.VMEM((1, H), jnp.float32),    # pooled-sum acc
                                pltpu.VMEM((1, 1), jnp.float32)],   # mask-count acc
            ),
            compiler_params=pltpu.CompilerParams(
                dimension_semantics=("parallel", "arbitrary"),
                vmem_limit_bytes=int(vmem_limit_bytes),
            ),
            cost_estimate=cost,
        )(hidden_states, mask3, gnn3, *weights)

    needs_modes = single_buffer_weights or (hidden_buffers not in (None, 2))
    if needs_modes:
        try:
            out = _pcall(True)
        except Exception:
            # installed Pallas rejected pipeline_mode hints -> default pipelining
            out = _pcall(False)
    else:
        out = _pcall(False)
    return out.reshape(B, 2)


def make_params(key, llm_dim, gnn_dim, fusion_dim):
    ks = jax.random.split(key, 8)
    half = fusion_dim // 2

    def init(k, shape, fan_in, dtype):
        w = jax.random.normal(k, shape, jnp.float32) / np.sqrt(fan_in)
        return w.astype(dtype)

    bf16 = jnp.bfloat16
    return {
        # large matmul weights in bf16 (MXU-native), tiny params in f32
        "w_llm": init(ks[0], (llm_dim, fusion_dim), llm_dim, bf16),
        "w_gnn": init(ks[1], (gnn_dim, fusion_dim), gnn_dim, bf16),
        "w_g1":  init(ks[2], (2 * fusion_dim, half), 2 * fusion_dim, bf16),
        "w_g2":  init(ks[3], (1, half), half, jnp.float32),      # stored as row vector
        "ln_f_g": jnp.ones((1, fusion_dim), jnp.float32),
        "ln_f_b": jnp.zeros((1, fusion_dim), jnp.float32),
        "w_c1":  init(ks[4], (fusion_dim, fusion_dim), fusion_dim, bf16),
        "ln1_g": jnp.ones((1, fusion_dim), jnp.float32),
        "ln1_b": jnp.zeros((1, fusion_dim), jnp.float32),
        "w_c2":  init(ks[5], (fusion_dim, half), fusion_dim, bf16),
        "ln2_g": jnp.ones((1, half), jnp.float32),
        "ln2_b": jnp.zeros((1, half), jnp.float32),
        # final classifier weight stored transposed [2, half] (f32) + bias [1, 2]
        "w_c3t": init(ks[6], (2, half), half, jnp.float32),
        "b_c3":  jnp.zeros((1, 2), jnp.float32),
    }


def reference_forward(hidden_states, attn_mask, gnn_emb, p):
    f32 = lambda a: a.astype(jnp.float32)
    hs = f32(hidden_states)
    mask = f32(attn_mask)[:, :, None]
    llm_emb = jnp.sum(hs * mask, axis=1) / jnp.maximum(jnp.sum(mask, axis=1), 1e-9)
    llm_proj = llm_emb @ f32(p["w_llm"])
    gnn_proj = f32(gnn_emb) @ f32(p["w_gnn"])
    gate_in = jnp.concatenate([llm_proj, gnn_proj], axis=1)
    gate_h = jax.nn.relu(gate_in @ f32(p["w_g1"]))
    g = jax.nn.sigmoid(jnp.sum(gate_h * p["w_g2"], axis=-1, keepdims=True))
    fused = g * llm_proj + (1.0 - g) * gnn_proj

    def ln(x, ga, be):
        mu = jnp.mean(x, -1, keepdims=True)
        va = jnp.mean((x - mu) ** 2, -1, keepdims=True)
        return (x - mu) * jax.lax.rsqrt(va + 1e-5) * ga + be

    fused = ln(fused, p["ln_f_g"], p["ln_f_b"])
    h1 = jax.nn.relu(ln(fused @ f32(p["w_c1"]), p["ln1_g"], p["ln1_b"]))
    h2 = jax.nn.relu(ln(h1 @ f32(p["w_c2"]), p["ln2_g"], p["ln2_b"]))
    return h2 @ p["w_c3t"].T + p["b_c3"]


if __name__ == "__main__":
    # Small shapes consistent with the forward: batch=2, seq=512 (max_length in
    # the config), llm hidden=32 (stand-in for 5120), gnn dim=16 (for 384),
    # fusion dim=32 (for 512).
    B, S, H, G, F = 2, 512, 32, 16, 32
    key = jax.random.PRNGKey(0)
    k_hs, k_gnn, k_p = jax.random.split(key, 3)

    hidden_states = jax.random.normal(k_hs, (B, S, H), jnp.float32).astype(jnp.bfloat16)
    attn_mask = jnp.concatenate(
        [jnp.ones((B, S - 128), jnp.int32), jnp.zeros((B, 128), jnp.int32)], axis=1)
    gnn_emb = jax.random.normal(k_gnn, (B, G), jnp.float32)
    params = make_params(k_p, H, G, F)

    ref = reference_forward(hidden_states, attn_mask, gnn_emb, params)

    # (a) explicit small tile -> exercises the multi-step sequence reduction
    logits_a = optimized_hybrid_forward(hidden_states, attn_mask, gnn_emb, params,
                                        s_tile=128)
    logits_a = jax.block_until_ready(logits_a)
    assert logits_a.shape == (B, 2)
    assert np.allclose(np.asarray(logits_a), np.asarray(ref), rtol=5e-2, atol=5e-2), (
        np.asarray(logits_a), np.asarray(ref))

    # (b) per-generation auto tile / VMEM-limit selection
    logits_b = optimized_hybrid_forward(hidden_states, attn_mask, gnn_emb, params)
    logits_b = jax.block_until_ready(logits_b)
    assert np.allclose(np.asarray(logits_b), np.asarray(ref), rtol=5e-2, atol=5e-2), (
        np.asarray(logits_b), np.asarray(ref))

    print("KERNEL_OK")
</pallas_src>

<mosaic_0001>
module attributes {stable_mosaic.version = 11 : i64} {
  func.func @hybrid_kernel(%arg0: i32, %arg1: i32, %arg2: memref<1x128x32xbf16, #tpu.memory_space<vmem>>, %arg3: memref<1x1x128xbf16, #tpu.memory_space<vmem>>, %arg4: memref<1x1x16xf32, #tpu.memory_space<vmem>>, %arg5: memref<32x32xbf16, #tpu.memory_space<vmem>>, %arg6: memref<16x32xbf16, #tpu.memory_space<vmem>>, %arg7: memref<64x16xbf16, #tpu.memory_space<vmem>>, %arg8: memref<1x16xf32, #tpu.memory_space<vmem>>, %arg9: memref<1x32xf32, #tpu.memory_space<vmem>>, %arg10: memref<1x32xf32, #tpu.memory_space<vmem>>, %arg11: memref<32x32xbf16, #tpu.memory_space<vmem>>, %arg12: memref<1x32xf32, #tpu.memory_space<vmem>>, %arg13: memref<1x32xf32, #tpu.memory_space<vmem>>, %arg14: memref<32x16xbf16, #tpu.memory_space<vmem>>, %arg15: memref<1x16xf32, #tpu.memory_space<vmem>>, %arg16: memref<1x16xf32, #tpu.memory_space<vmem>>, %arg17: memref<2x16xf32, #tpu.memory_space<vmem>>, %arg18: memref<1x2xf32, #tpu.memory_space<vmem>>, %arg19: memref<1x1x2xf32, #tpu.memory_space<vmem>>, %arg20: memref<1x32xf32, #tpu.memory_space<vmem>>, %arg21: memref<1x1xf32, #tpu.memory_space<vmem>>) attributes {dimension_semantics = [#tpu.dimension_semantics<parallel>, #tpu.dimension_semantics<arbitrary>], iteration_bounds = array<i64: 2, 4>, scalar_prefetch = 0 : i64, scratch_operands = 2 : i64, tpu.core_type = #tpu.core_type<tc>, window_params = [{transform_indices = @transform_0, window_bounds = array<i64: 1, 128, 32>}, {transform_indices = @transform_1, window_bounds = array<i64: 1, 1, 128>}, {transform_indices = @transform_2, window_bounds = array<i64: 1, 1, 16>}, {pipeline_mode = #tpu.pipeline_mode<synchronous>, transform_indices = @transform_3, window_bounds = array<i64: 32, 32>}, {pipeline_mode = #tpu.pipeline_mode<synchronous>, transform_indices = @transform_4, window_bounds = array<i64: 16, 32>}, {pipeline_mode = #tpu.pipeline_mode<synchronous>, transform_indices = @transform_5, window_bounds = array<i64: 64, 16>}, {pipeline_mode = #tpu.pipeline_mode<synchronous>, transform_indices = @transform_6, window_bounds = array<i64: 1, 16>}, {pipeline_mode = #tpu.pipeline_mode<synchronous>, transform_indices = @transform_7, window_bounds = array<i64: 1, 32>}, {pipeline_mode = #tpu.pipeline_mode<synchronous>, transform_indices = @transform_8, window_bounds = array<i64: 1, 32>}, {pipeline_mode = #tpu.pipeline_mode<synchronous>, transform_indices = @transform_9, window_bounds = array<i64: 32, 32>}, {pipeline_mode = #tpu.pipeline_mode<synchronous>, transform_indices = @transform_10, window_bounds = array<i64: 1, 32>}, {pipeline_mode = #tpu.pipeline_mode<synchronous>, transform_indices = @transform_11, window_bounds = array<i64: 1, 32>}, {pipeline_mode = #tpu.pipeline_mode<synchronous>, transform_indices = @transform_12, window_bounds = array<i64: 32, 16>}, {pipeline_mode = #tpu.pipeline_mode<synchronous>, transform_indices = @transform_13, window_bounds = array<i64: 1, 16>}, {pipeline_mode = #tpu.pipeline_mode<synchronous>, transform_indices = @transform_14, window_bounds = array<i64: 1, 16>}, {pipeline_mode = #tpu.pipeline_mode<synchronous>, transform_indices = @transform_15, window_bounds = array<i64: 2, 16>}, {pipeline_mode = #tpu.pipeline_mode<synchronous>, transform_indices = @transform_16, window_bounds = array<i64: 1, 2>}, {transform_indices = @transform_17, window_bounds = array<i64: 1, 1, 2>}]} {
    %c0_i32 = arith.constant 0 : i32
    %0 = arith.cmpi eq, %arg1, %c0_i32 : i32
    %1 = arith.extui %0 : i1 to i32
    %c0_i32_0 = arith.constant 0 : i32
    %2 = arith.cmpi ne, %1, %c0_i32_0 : i32
    scf.if %2 {
      %cst_16 = arith.constant 0.000000e+00 : f32
      %20 = vector.broadcast %cst_16 : f32 to vector<1x32xf32>
      %c0_17 = arith.constant 0 : index
      %c0_18 = arith.constant 0 : index
      %21 = vector.load %arg20[%c0_17, %c0_18] : memref<1x32xf32, #tpu.memory_space<vmem>>, vector<1x32xf32>
      tpu.vector_store %arg20[%c0_17, %c0_18], %20 {strides = array<i32>} : memref<1x32xf32, #tpu.memory_space<vmem>>, vector<1x32xf32>,
      %cst_19 = arith.constant 0.000000e+00 : f32
      %22 = vector.broadcast %cst_19 : f32 to vector<1x1xf32>
      %c0_20 = arith.constant 0 : index
      %c0_21 = arith.constant 0 : index
      %23 = vector.load %arg21[%c0_20, %c0_21] : memref<1x1xf32, #tpu.memory_space<vmem>>, vector<1x1xf32>
      tpu.vector_store %arg21[%c0_20, %c0_21], %22 {strides = array<i32>} : memref<1x1xf32, #tpu.memory_space<vmem>>, vector<1x1xf32>,
    } else {
    }
    %c0 = arith.constant 0 : index
    %c0_1 = arith.constant 0 : index
    %c0_2 = arith.constant 0 : index
    %3 = vector.load %arg3[%c0, %c0_1, %c0_2] : memref<1x1x128xbf16, #tpu.memory_space<vmem>>, vector<1x1x128xbf16>
    %4 = vector.shape_cast %3 : vector<1x1x128xbf16> to vector<1x128xbf16>
    %c0_3 = arith.constant 0 : index
    %c0_4 = arith.constant 0 : index
    %5 = vector.load %arg20[%c0_3, %c0_4] : memref<1x32xf32, #tpu.memory_space<vmem>>, vector<1x32xf32>
    %c0_5 = arith.constant 0 : index
    %c0_6 = arith.constant 0 : index
    %c0_7 = arith.constant 0 : index
    %6 = vector.load %arg2[%c0_5, %c0_6, %c0_7] : memref<1x128x32xbf16, #tpu.memory_space<vmem>>, vector<1x128x32xbf16>
    %7 = vector.shape_cast %6 : vector<1x128x32xbf16> to vector<128x32xbf16>
    %cst = arith.constant dense<0.000000e+00> : vector<1x32xf32>
    %8 = tpu.matmul %4, %7, %cst {dimension_numbers = #tpu.dot_dimension_numbers<[1], [0], [0], [1], [0, 0, 1, 1], [], []>} : vector<1x128xbf16>, vector<128x32xbf16>, vector<1x32xf32> -> vector<1x32xf32>
    %9 = arith.addf %5, %8 : vector<1x32xf32>
    %c0_8 = arith.constant 0 : index
    %c0_9 = arith.constant 0 : index
    %10 = vector.load %arg20[%c0_8, %c0_9] : memref<1x32xf32, #tpu.memory_space<vmem>>, vector<1x32xf32>
    tpu.vector_store %arg20[%c0_8, %c0_9], %9 {strides = array<i32>} : memref<1x32xf32, #tpu.memory_space<vmem>>, vector<1x32xf32>,
    %c0_10 = arith.constant 0 : index
    %c0_11 = arith.constant 0 : index
    %11 = vector.load %arg21[%c0_10, %c0_11] : memref<1x1xf32, #tpu.memory_space<vmem>>, vector<1x1xf32>
    %12 = arith.extf %4 : vector<1x128xbf16> to vector<1x128xf32>
    %cst_12 = arith.constant dense<0.000000e+00> : vector<1xf32>
    %13 = vector.multi_reduction <add>, %12, %cst_12 [1] : vector<1x128xf32> to vector<1xf32>
    %14 = vector.shape_cast %13 : vector<1xf32> to vector<1x1xf32>
    %15 = arith.addf %11, %14 : vector<1x1xf32>
    %c0_13 = arith.constant 0 : index
    %c0_14 = arith.constant 0 : index
    %16 = vector.load %arg21[%c0_13, %c0_14] : memref<1x1xf32, #tpu.memory_space<vmem>>, vector<1x1xf32>
    tpu.vector_store %arg21[%c0_13, %c0_14], %15 {strides = array<i32>} : memref<1x1xf32, #tpu.memory_space<vmem>>, vector<1x1xf32>,
    %c3_i32 = arith.constant 3 : i32
    %17 = arith.cmpi eq, %arg1, %c3_i32 : i32
    %18 = arith.extui %17 : i1 to i32
    %c0_i32_15 = arith.constant 0 : i32
    %19 = arith.cmpi ne, %18, %c0_i32_15 : i32
    scf.if %19 {
      %c0_16 = arith.constant 0 : index
      %c0_17 = arith.constant 0 : index
      %20 = vector.load %arg21[%c0_16, %c0_17] : memref<1x1xf32, #tpu.memory_space<vmem>>, vector<1x1xf32>
      %cst_18 = arith.constant 9.99999971E-10 : f32
      %21 = vector.broadcast %cst_18 : f32 to vector<1x1xf32>
      %22 = arith.maximumf %20, %21 : vector<1x1xf32>
      %cst_19 = arith.constant 1.000000e+00 : f32
      %23 = vector.broadcast %cst_19 : f32 to vector<1x1xf32>
      %24 = arith.divf %23, %22 : vector<1x1xf32>
      %c0_20 = arith.constant 0 : index
      %c0_21 = arith.constant 0 : index
      %25 = vector.load %arg20[%c0_20, %c0_21] : memref<1x32xf32, #tpu.memory_space<vmem>>, vector<1x32xf32>
      %26 = vector.broadcast %24 : vector<1x1xf32> to vector<1x32xf32>
      %27 = arith.mulf %25, %26 : vector<1x32xf32>
      %c0_22 = arith.constant 0 : index
      %c0_23 = arith.constant 0 : index
      %c0_24 = arith.constant 0 : index
      %28 = vector.load %arg4[%c0_22, %c0_23, %c0_24] : memref<1x1x16xf32, #tpu.memory_space<vmem>>, vector<1x1x16xf32>
      %29 = vector.shape_cast %28 : vector<1x1x16xf32> to vector<1x16xf32>
      %30 = arith.truncf %27 : vector<1x32xf32> to vector<1x32xbf16>
      %c0_25 = arith.constant 0 : index
      %c0_26 = arith.constant 0 : index
      %31 = vector.load %arg5[%c0_25, %c0_26] : memref<32x32xbf16, #tpu.memory_space<vmem>>, vector<32x32xbf16>
      %cst_27 = arith.constant dense<0.000000e+00> : vector<1x32xf32>
      %32 = tpu.matmul %30, %31, %cst_27 {dimension_numbers = #tpu.dot_dimension_numbers<[1], [0], [0], [1], [0, 0, 1, 1], [], []>} : vector<1x32xbf16>, vector<32x32xbf16>, vector<1x32xf32> -> vector<1x32xf32>
      %33 = arith.truncf %29 : vector<1x16xf32> to vector<1x16xbf16>
      %c0_28 = arith.constant 0 : index
      %c0_29 = arith.constant 0 : index
      %34 = vector.load %arg6[%c0_28, %c0_29] : memref<16x32xbf16, #tpu.memory_space<vmem>>, vector<16x32xbf16>
      %cst_30 = arith.constant dense<0.000000e+00> : vector<1x32xf32>
      %35 = tpu.matmul %33, %34, %cst_30 {dimension_numbers = #tpu.dot_dimension_numbers<[1], [0], [0], [1], [0, 0, 1, 1], [], []>} : vector<1x16xbf16>, vector<16x32xbf16>, vector<1x32xf32> -> vector<1x32xf32>
      %c0_31 = arith.constant 0 : index
      %c0_32 = arith.constant 0 : index
      %36 = vector.load %arg7[%c0_31, %c0_32] : memref<64x16xbf16, #tpu.memory_space<vmem>>, vector<64x16xbf16>
      %37 = arith.truncf %32 : vector<1x32xf32> to vector<1x32xbf16>
      %38 = vector.extract_strided_slice %36 {offsets = [0, 0], sizes = [32, 16], strides = [1, 1]} : vector<64x16xbf16> to vector<32x16xbf16>
      %cst_33 = arith.constant dense<0.000000e+00> : vector<1x16xf32>
      %39 = tpu.matmul %37, %38, %cst_33 {dimension_numbers = #tpu.dot_dimension_numbers<[1], [0], [0], [1], [0, 0, 1, 1], [], []>} : vector<1x32xbf16>, vector<32x16xbf16>, vector<1x16xf32> -> vector<1x16xf32>
      %40 = arith.truncf %35 : vector<1x32xf32> to vector<1x32xbf16>
      %41 = vector.extract_strided_slice %36 {offsets = [32, 0], sizes = [32, 16], strides = [1, 1]} : vector<64x16xbf16> to vector<32x16xbf16>
      %cst_34 = arith.constant dense<0.000000e+00> : vector<1x16xf32>
      %42 = tpu.matmul %40, %41, %cst_34 {dimension_numbers = #tpu.dot_dimension_numbers<[1], [0], [0], [1], [0, 0, 1, 1], [], []>} : vector<1x32xbf16>, vector<32x16xbf16>, vector<1x16xf32> -> vector<1x16xf32>
      %43 = arith.addf %39, %42 : vector<1x16xf32>
      %cst_35 = arith.constant 0.000000e+00 : f32
      %44 = vector.broadcast %cst_35 : f32 to vector<1x16xf32>
      %45 = arith.maximumf %43, %44 : vector<1x16xf32>
      %c0_36 = arith.constant 0 : index
      %c0_37 = arith.constant 0 : index
      %46 = vector.load %arg8[%c0_36, %c0_37] : memref<1x16xf32, #tpu.memory_space<vmem>>, vector<1x16xf32>
      %47 = arith.mulf %45, %46 : vector<1x16xf32>
      %cst_38 = arith.constant dense<0.000000e+00> : vector<1xf32>
      %48 = vector.multi_reduction <add>, %47, %cst_38 [1] : vector<1x16xf32> to vector<1xf32>
      %49 = vector.shape_cast %48 : vector<1xf32> to vector<1x1xf32>
      %50 = arith.negf %49 : vector<1x1xf32>
      %51 = math.exp %50 : vector<1x1xf32>
      %cst_39 = arith.constant 1.000000e+00 : f32
      %52 = vector.broadcast %cst_39 : f32 to vector<1x1xf32>
      %53 = arith.addf %52, %51 : vector<1x1xf32>
      %54 = arith.divf %52, %53 : vector<1x1xf32>
      %55 = vector.broadcast %54 : vector<1x1xf32> to vector<1x32xf32>
      %56 = arith.mulf %55, %32 : vector<1x32xf32>
      %cst_40 = arith.constant 1.000000e+00 : f32
      %57 = vector.broadcast %cst_40 : f32 to vector<1x1xf32>
      %58 = arith.subf %57, %54 : vector<1x1xf32>
      %59 = vector.broadcast %58 : vector<1x1xf32> to vector<1x32xf32>
      %60 = arith.mulf %59, %35 : vector<1x32xf32>
      %61 = arith.addf %56, %60 : vector<1x32xf32>
      %c0_41 = arith.constant 0 : index
      %c0_42 = arith.constant 0 : index
      %62 = vector.load %arg9[%c0_41, %c0_42] : memref<1x32xf32, #tpu.memory_space<vmem>>, vector<1x32xf32>
      %c0_43 = arith.constant 0 : index
      %c0_44 = arith.constant 0 : index
      %63 = vector.load %arg10[%c0_43, %c0_44] : memref<1x32xf32, #tpu.memory_space<vmem>>, vector<1x32xf32>
      %cst_45 = arith.constant dense<0.000000e+00> : vector<1xf32>
      %64 = vector.multi_reduction <add>, %61, %cst_45 [1] : vector<1x32xf32> to vector<1xf32>
      %65 = vector.shape_cast %64 : vector<1xf32> to vector<1x1xf32>
      %cst_46 = arith.constant 3.200000e+01 : f32
      %66 = vector.broadcast %cst_46 : f32 to vector<1x1xf32>
      %67 = arith.divf %65, %66 : vector<1x1xf32>
      %68 = vector.broadcast %67 : vector<1x1xf32> to vector<1x32xf32>
      %69 = arith.subf %61, %68 : vector<1x32xf32>
      %70 = arith.mulf %69, %69 : vector<1x32xf32>
      %cst_47 = arith.constant dense<0.000000e+00> : vector<1xf32>
      %71 = vector.multi_reduction <add>, %70, %cst_47 [1] : vector<1x32xf32> to vector<1xf32>
      %72 = vector.shape_cast %71 : vector<1xf32> to vector<1x1xf32>
      %cst_48 = arith.constant 3.200000e+01 : f32
      %73 = vector.broadcast %cst_48 : f32 to vector<1x1xf32>
      %74 = arith.divf %72, %73 : vector<1x1xf32>
      %75 = vector.broadcast %67 : vector<1x1xf32> to vector<1x32xf32>
      %76 = arith.subf %61, %75 : vector<1x32xf32>
      %cst_49 = arith.constant 9.99999974E-6 : f32
      %77 = vector.broadcast %cst_49 : f32 to vector<1x1xf32>
      %78 = arith.addf %74, %77 : vector<1x1xf32>
      %79 = math.rsqrt %78 : vector<1x1xf32>
      %80 = vector.broadcast %79 : vector<1x1xf32> to vector<1x32xf32>
      %81 = arith.mulf %76, %80 : vector<1x32xf32>
      %82 = arith.mulf %81, %62 : vector<1x32xf32>
      %83 = arith.addf %82, %63 : vector<1x32xf32>
      %84 = arith.truncf %83 : vector<1x32xf32> to vector<1x32xbf16>
      %c0_50 = arith.constant 0 : index
      %c0_51 = arith.constant 0 : index
      %85 = vector.load %arg11[%c0_50, %c0_51] : memref<32x32xbf16, #tpu.memory_space<vmem>>, vector<32x32xbf16>
      %cst_52 = arith.constant dense<0.000000e+00> : vector<1x32xf32>
      %86 = tpu.matmul %84, %85, %cst_52 {dimension_numbers = #tpu.dot_dimension_numbers<[1], [0], [0], [1], [0, 0, 1, 1], [], []>} : vector<1x32xbf16>, vector<32x32xbf16>, vector<1x32xf32> -> vector<1x32xf32>
      %c0_53 = arith.constant 0 : index
      %c0_54 = arith.constant 0 : index
      %87 = vector.load %arg12[%c0_53, %c0_54] : memref<1x32xf32, #tpu.memory_space<vmem>>, vector<1x32xf32>
      %c0_55 = arith.constant 0 : index
      %c0_56 = arith.constant 0 : index
      %88 = vector.load %arg13[%c0_55, %c0_56] : memref<1x32xf32, #tpu.memory_space<vmem>>, vector<1x32xf32>
      %cst_57 = arith.constant dense<0.000000e+00> : vector<1xf32>
      %89 = vector.multi_reduction <add>, %86, %cst_57 [1] : vector<1x32xf32> to vector<1xf32>
      %90 = vector.shape_cast %89 : vector<1xf32> to vector<1x1xf32>
      %cst_58 = arith.constant 3.200000e+01 : f32
      %91 = vector.broadcast %cst_58 : f32 to vector<1x1xf32>
      %92 = arith.divf %90, %91 : vector<1x1xf32>
      %93 = vector.broadcast %92 : vector<1x1xf32> to vector<1x32xf32>
      %94 = arith.subf %86, %93 : vector<1x32xf32>
      %95 = arith.mulf %94, %94 : vector<1x32xf32>
      %cst_59 = arith.constant dense<0.000000e+00> : vector<1xf32>
      %96 = vector.multi_reduction <add>, %95, %cst_59 [1] : vector<1x32xf32> to vector<1xf32>
      %97 = vector.shape_cast %96 : vector<1xf32> to vector<1x1xf32>
      %cst_60 = arith.constant 3.200000e+01 : f32
      %98 = vector.broadcast %cst_60 : f32 to vector<1x1xf32>
      %99 = arith.divf %97, %98 : vector<1x1xf32>
      %100 = vector.broadcast %92 : vector<1x1xf32> to vector<1x32xf32>
      %101 = arith.subf %86, %100 : vector<1x32xf32>
      %cst_61 = arith.constant 9.99999974E-6 : f32
      %102 = vector.broadcast %cst_61 : f32 to vector<1x1xf32>
      %103 = arith.addf %99, %102 : vector<1x1xf32>
      %104 = math.rsqrt %103 : vector<1x1xf32>
      %105 = vector.broadcast %104 : vector<1x1xf32> to vector<1x32xf32>
      %106 = arith.mulf %101, %105 : vector<1x32xf32>
      %107 = arith.mulf %106, %87 : vector<1x32xf32>
      %108 = arith.addf %107, %88 : vector<1x32xf32>
      %cst_62 = arith.constant 0.000000e+00 : f32
      %109 = vector.broadcast %cst_62 : f32 to vector<1x32xf32>
      %110 = arith.maximumf %108, %109 : vector<1x32xf32>
      %111 = arith.truncf %110 : vector<1x32xf32> to vector<1x32xbf16>
      %c0_63 = arith.constant 0 : index
      %c0_64 = arith.constant 0 : index
      %112 = vector.load %arg14[%c0_63, %c0_64] : memref<32x16xbf16, #tpu.memory_space<vmem>>, vector<32x16xbf16>
      %cst_65 = arith.constant dense<0.000000e+00> : vector<1x16xf32>
      %113 = tpu.matmul %111, %112, %cst_65 {dimension_numbers = #tpu.dot_dimension_numbers<[1], [0], [0], [1], [0, 0, 1, 1], [], []>} : vector<1x32xbf16>, vector<32x16xbf16>, vector<1x16xf32> -> vector<1x16xf32>
      %c0_66 = arith.constant 0 : index
      %c0_67 = arith.constant 0 : index
      %114 = vector.load %arg15[%c0_66, %c0_67] : memref<1x16xf32, #tpu.memory_space<vmem>>, vector<1x16xf32>
      %c0_68 = arith.constant 0 : index
      %c0_69 = arith.constant 0 : index
      %115 = vector.load %arg16[%c0_68, %c0_69] : memref<1x16xf32, #tpu.memory_space<vmem>>, vector<1x16xf32>
      %cst_70 = arith.constant dense<0.000000e+00> : vector<1xf32>
      %116 = vector.multi_reduction <add>, %113, %cst_70 [1] : vector<1x16xf32> to vector<1xf32>
      %117 = vector.shape_cast %116 : vector<1xf32> to vector<1x1xf32>
      %cst_71 = arith.constant 1.600000e+01 : f32
      %118 = vector.broadcast %cst_71 : f32 to vector<1x1xf32>
      %119 = arith.divf %117, %118 : vector<1x1xf32>
      %120 = vector.broadcast %119 : vector<1x1xf32> to vector<1x16xf32>
      %121 = arith.subf %113, %120 : vector<1x16xf32>
      %122 = arith.mulf %121, %121 : vector<1x16xf32>
      %cst_72 = arith.constant dense<0.000000e+00> : vector<1xf32>
      %123 = vector.multi_reduction <add>, %122, %cst_72 [1] : vector<1x16xf32> to vector<1xf32>
      %124 = vector.shape_cast %123 : vector<1xf32> to vector<1x1xf32>
      %cst_73 = arith.constant 1.600000e+01 : f32
      %125 = vector.broadcast %cst_73 : f32 to vector<1x1xf32>
      %126 = arith.divf %124, %125 : vector<1x1xf32>
      %127 = vector.broadcast %119 : vector<1x1xf32> to vector<1x16xf32>
      %128 = arith.subf %113, %127 : vector<1x16xf32>
      %cst_74 = arith.constant 9.99999974E-6 : f32
      %129 = vector.broadcast %cst_74 : f32 to vector<1x1xf32>
      %130 = arith.addf %126, %129 : vector<1x1xf32>
      %131 = math.rsqrt %130 : vector<1x1xf32>
      %132 = vector.broadcast %131 : vector<1x1xf32> to vector<1x16xf32>
      %133 = arith.mulf %128, %132 : vector<1x16xf32>
      %134 = arith.mulf %133, %114 : vector<1x16xf32>
      %135 = arith.addf %134, %115 : vector<1x16xf32>
      %cst_75 = arith.constant 0.000000e+00 : f32
      %136 = vector.broadcast %cst_75 : f32 to vector<1x16xf32>
      %137 = arith.maximumf %135, %136 : vector<1x16xf32>
      %c0_76 = arith.constant 0 : index
      %c0_77 = arith.constant 0 : index
      %138 = vector.load %arg17[%c0_76, %c0_77] : memref<2x16xf32, #tpu.memory_space<vmem>>, vector<2x16xf32>
      %139 = vector.extract_strided_slice %138 {offsets = [0, 0], sizes = [1, 16], strides = [1, 1]} : vector<2x16xf32> to vector<1x16xf32>
      %140 = arith.mulf %137, %139 : vector<1x16xf32>
      %cst_78 = arith.constant dense<0.000000e+00> : vector<1xf32>
      %141 = vector.multi_reduction <add>, %140, %cst_78 [1] : vector<1x16xf32> to vector<1xf32>
      %142 = vector.shape_cast %141 : vector<1xf32> to vector<1x1xf32>
      %143 = vector.extract_strided_slice %138 {offsets = [1, 0], sizes = [1, 16], strides = [1, 1]} : vector<2x16xf32> to vector<1x16xf32>
      %144 = arith.mulf %137, %143 : vector<1x16xf32>
      %cst_79 = arith.constant dense<0.000000e+00> : vector<1xf32>
      %145 = vector.multi_reduction <add>, %144, %cst_79 [1] : vector<1x16xf32> to vector<1xf32>
      %146 = vector.shape_cast %145 : vector<1xf32> to vector<1x1xf32>
      %147 = tpu.iota {dimensions = array<i32: 1>} : vector<1x2xi32>
      %c0_80 = arith.constant 0 : index
      %c0_81 = arith.constant 0 : index
      %148 = vector.load %arg18[%c0_80, %c0_81] : memref<1x2xf32, #tpu.memory_space<vmem>>, vector<1x2xf32>
      %c0_i32_82 = arith.constant 0 : i32
      %149 = vector.broadcast %c0_i32_82 : i32 to vector<1x2xi32>
      %150 = arith.cmpi eq, %147, %149 : vector<1x2xi32>
      %151 = vector.shape_cast %142 : vector<1x1xf32> to vector<1x1xf32>
      %152 = vector.broadcast %151 : vector<1x1xf32> to vector<1x2xf32>
      %153 = vector.shape_cast %146 : vector<1x1xf32> to vector<1x1xf32>
      %154 = vector.broadcast %153 : vector<1x1xf32> to vector<1x2xf32>
      %155 = arith.select %150, %152, %154 : vector<1x2xi1>, vector<1x2xf32>
      %156 = arith.addf %148, %155 : vector<1x2xf32>
      %c0_83 = arith.constant 0 : index
      %c0_84 = arith.constant 0 : index
      %c0_85 = arith.constant 0 : index
      %157 = vector.load %arg19[%c0_83, %c0_84, %c0_85] : memref<1x1x2xf32, #tpu.memory_space<vmem>>, vector<1x1x2xf32>
      %158 = vector.shape_cast %157 : vector<1x1x2xf32> to vector<1x2xf32>
      %159 = vector.shape_cast %156 : vector<1x2xf32> to vector<1x1x2xf32>
      tpu.vector_store %arg19[%c0_83, %c0_84, %c0_85], %159 {strides = array<i32>} : memref<1x1x2xf32, #tpu.memory_space<vmem>>, vector<1x1x2xf32>,
    } else {
    }
    return
  }
  func.func @transform_0(%arg0: i32, %arg1: i32) -> (i32, i32, i32) {
    %c0_i32 = arith.constant 0 : i32
    %c0_i32_0 = arith.constant 0 : i32
    return %arg0, %arg1, %c0_i32 : i32, i32, i32
  }
  func.func @transform_1(%arg0: i32, %arg1: i32) -> (i32, i32, i32) {
    %c0_i32 = arith.constant 0 : i32
    %c0_i32_0 = arith.constant 0 : i32
    return %arg0, %c0_i32, %arg1 : i32, i32, i32
  }
  func.func @transform_2(%arg0: i32, %arg1: i32) -> (i32, i32, i32) {
    %c0_i32 = arith.constant 0 : i32
    %c0_i32_0 = arith.constant 0 : i32
    %c0_i32_1 = arith.constant 0 : i32
    return %arg0, %c0_i32, %c0_i32_0 : i32, i32, i32
  }
  func.func @transform_3(%arg0: i32, %arg1: i32) -> (i32, i32) {
    %c0_i32 = arith.constant 0 : i32
    %c0_i32_0 = arith.constant 0 : i32
    %c0_i32_1 = arith.constant 0 : i32
    return %c0_i32, %c0_i32_0 : i32, i32
  }
  func.func @transform_4(%arg0: i32, %arg1: i32) -> (i32, i32) {
    %c0_i32 = arith.constant 0 : i32
    %c0_i32_0 = arith.constant 0 : i32
    %c0_i32_1 = arith.constant 0 : i32
    return %c0_i32, %c0_i32_0 : i32, i32
  }
  func.func @transform_5(%arg0: i32, %arg1: i32) -> (i32, i32) {
    %c0_i32 = arith.constant 0 : i32
    %c0_i32_0 = arith.constant 0 : i32
    %c0_i32_1 = arith.constant 0 : i32
    return %c0_i32, %c0_i32_0 : i32, i32
  }
  func.func @transform_6(%arg0: i32, %arg1: i32) -> (i32, i32) {
    %c0_i32 = arith.constant 0 : i32
    %c0_i32_0 = arith.constant 0 : i32
    %c0_i32_1 = arith.constant 0 : i32
    return %c0_i32, %c0_i32_0 : i32, i32
  }
  func.func @transform_7(%arg0: i32, %arg1: i32) -> (i32, i32) {
    %c0_i32 = arith.constant 0 : i32
    %c0_i32_0 = arith.constant 0 : i32
    %c0_i32_1 = arith.constant 0 : i32
    return %c0_i32, %c0_i32_0 : i32, i32
  }
  func.func @transform_8(%arg0: i32, %arg1: i32) -> (i32, i32) {
    %c0_i32 = arith.constant 0 : i32
    %c0_i32_0 = arith.constant 0 : i32
    %c0_i32_1 = arith.constant 0 : i32
    return %c0_i32, %c0_i32_0 : i32, i32
  }
  func.func @transform_9(%arg0: i32, %arg1: i32) -> (i32, i32) {
    %c0_i32 = arith.constant 0 : i32
    %c0_i32_0 = arith.constant 0 : i32
    %c0_i32_1 = arith.constant 0 : i32
    return %c0_i32, %c0_i32_0 : i32, i32
  }
  func.func @transform_10(%arg0: i32, %arg1: i32) -> (i32, i32) {
    %c0_i32 = arith.constant 0 : i32
    %c0_i32_0 = arith.constant 0 : i32
    %c0_i32_1 = arith.constant 0 : i32
    return %c0_i32, %c0_i32_0 : i32, i32
  }
  func.func @transform_11(%arg0: i32, %arg1: i32) -> (i32, i32) {
    %c0_i32 = arith.constant 0 : i32
    %c0_i32_0 = arith.constant 0 : i32
    %c0_i32_1 = arith.constant 0 : i32
    return %c0_i32, %c0_i32_0 : i32, i32
  }
  func.func @transform_12(%arg0: i32, %arg1: i32) -> (i32, i32) {
    %c0_i32 = arith.constant 0 : i32
    %c0_i32_0 = arith.constant 0 : i32
    %c0_i32_1 = arith.constant 0 : i32
    return %c0_i32, %c0_i32_0 : i32, i32
  }
  func.func @transform_13(%arg0: i32, %arg1: i32) -> (i32, i32) {
    %c0_i32 = arith.constant 0 : i32
    %c0_i32_0 = arith.constant 0 : i32
    %c0_i32_1 = arith.constant 0 : i32
    return %c0_i32, %c0_i32_0 : i32, i32
  }
  func.func @transform_14(%arg0: i32, %arg1: i32) -> (i32, i32) {
    %c0_i32 = arith.constant 0 : i32
    %c0_i32_0 = arith.constant 0 : i32
    %c0_i32_1 = arith.constant 0 : i32
    return %c0_i32, %c0_i32_0 : i32, i32
  }
  func.func @transform_15(%arg0: i32, %arg1: i32) -> (i32, i32) {
    %c0_i32 = arith.constant 0 : i32
    %c0_i32_0 = arith.constant 0 : i32
    %c0_i32_1 = arith.constant 0 : i32
    return %c0_i32, %c0_i32_0 : i32, i32
  }
  func.func @transform_16(%arg0: i32, %arg1: i32) -> (i32, i32) {
    %c0_i32 = arith.constant 0 : i32
    %c0_i32_0 = arith.constant 0 : i32
    %c0_i32_1 = arith.constant 0 : i32
    return %c0_i32, %c0_i32_0 : i32, i32
  }
  func.func @transform_17(%arg0: i32, %arg1: i32) -> (i32, i32, i32) {
    %c0_i32 = arith.constant 0 : i32
    %c0_i32_0 = arith.constant 0 : i32
    %c0_i32_1 = arith.constant 0 : i32
    return %arg0, %c0_i32, %c0_i32_0 : i32, i32, i32
  }
}

</mosaic_0001>

<llo_original>
// kernel: tpu_custom_call.1
$region0: #{tpu_custom_call.1}
  #allocation0 [shape = 'u32[]', space=smem, size = 0x4, offset = 0x4, fixed_abs, tag = 'smem constant byte address 0x4 - core index']
  #allocation1 [shape = 'u32[144,128]{1,0:T(1,128)}', space=vmem, size = 0x12000, scoped, tag = 'internal scratch']
  #allocation2 [shape = 'f32[1,32]{1,0:T(1,128)}', space=vmem, size = 0x200, scoped, tag = 'scratch operand']
  #allocation3 [shape = 'f32[1,1]{1,0:T(1,128)}', space=vmem, size = 0x200, scoped, tag = 'scratch operand']
  %s0 = inlined_call_operand.vmem [shape: bf16[2,512,32], index: 0, kind: input, shape index: {}]
  %s1 = inlined_call_operand.vmem [shape: bf16[2,1,512], index: 1, kind: input, shape index: {}]
  %s2 = inlined_call_operand.vmem [shape: f32[2,1,16], index: 2, kind: input, shape index: {}]
  %s3 = inlined_call_operand.vmem [shape: bf16[32,32], index: 3, kind: input, shape index: {}]
  %s4 = inlined_call_operand.vmem [shape: bf16[16,32], index: 4, kind: input, shape index: {}]
  %s5 = inlined_call_operand.vmem [shape: bf16[64,16], index: 5, kind: input, shape index: {}]
  %s6 = inlined_call_operand.vmem [shape: f32[1,16], index: 6, kind: input, shape index: {}]
  %s7 = inlined_call_operand.vmem [shape: f32[1,32], index: 7, kind: input, shape index: {}]
  %s8 = inlined_call_operand.vmem [shape: f32[1,32], index: 8, kind: input, shape index: {}]
  %s9 = inlined_call_operand.vmem [shape: bf16[32,32], index: 9, kind: input, shape index: {}]
  %s10 = inlined_call_operand.vmem [shape: f32[1,32], index: 10, kind: input, shape index: {}]
  %s11 = inlined_call_operand.vmem [shape: f32[1,32], index: 11, kind: input, shape index: {}]
  %s12 = inlined_call_operand.vmem [shape: bf16[32,16], index: 12, kind: input, shape index: {}]
  %s13 = inlined_call_operand.vmem [shape: f32[1,16], index: 13, kind: input, shape index: {}]
  %s14 = inlined_call_operand.vmem [shape: f32[1,16], index: 14, kind: input, shape index: {}]
  %s15 = inlined_call_operand.vmem [shape: f32[2,16], index: 15, kind: input, shape index: {}]
  %s16 = inlined_call_operand.vmem [shape: f32[1,2], index: 16, kind: input, shape index: {}]
  %s17 = inlined_call_operand.hbm [shape: f32[2,1,2], index: 17, kind: output, shape index: {}]
  %s18 = sld [smem:[#allocation0]]
  $region109: #{tpu_custom_call.1} parent=0
    _
  %s20 = ssub.s32 1, %s18
  %s21 = scalar_select 0, %s20, %s18
  $region1: #{tpu_custom_call.1} parent=0
    #allocation4 [shape = 'u8[1024]{0}', space=vmem, size = 0x400, scoped, tag = 'output window, operand 0']
    #allocation5 [shape = 's32[2]{0}', space=sflag, size = 0x8, scoped, tag = 'scoped memory for tpu_custom_call.1']
    %22 = vsyncpa [#allocation5], 0
    %s23 = scalar_lea.sflag [#allocation5], 1
    %24 = vsyncpa %s23, 0
    loop: start=0, step=1, limit=10
    $region2: #{tpu_custom_call.1} parent=1 // loop_pre_header
      _
    $region3: #{tpu_custom_call.1} parent=1 // loop_header
      %s26 = sphi 0, %s30
      %p27 = scmp.ge.s32.totalorder %s26, 10
      %s33 = sphi 0, %s45
      %s34 = sphi 0, %s41
      %s35 = sphi 0, %s33
      %s36 = sphi 0, %s34
      %s37 = sphi 0, %s35
      %s38 = sphi 0, %s36
      %s50 = sphi 0, %s52
      %s53 = sphi 0, %s50
      %s54 = sphi 0, %s53
      %s70 = sphi 0, %s54
      %s78 = sphi 0, %s80
      %s81 = sphi 0, %s78
      %s82 = sphi 0, %s81
      %s98 = sphi 0, %s82
      %s104 = sphi 0, %s106
      %s107 = sphi 0, %s104
      %s108 = sphi 0, %s107
      %s124 = sphi 0, %s108
      %s128 = sphi 0, %s128
      %s130 = sphi 0, %s128
      %s131 = sphi 0, %s130
      %s145 = sphi 0, %s131
      %s149 = sphi 0, %s149
      %s151 = sphi 0, %s149
      %s152 = sphi 0, %s151
      %s166 = sphi 0, %s152
      %s170 = sphi 0, %s170
      %s172 = sphi 0, %s170
      %s173 = sphi 0, %s172
      %s187 = sphi 0, %s173
      %s191 = sphi 0, %s191
      %s193 = sphi 0, %s191
      %s194 = sphi 0, %s193
      %s208 = sphi 0, %s194
      %s212 = sphi 0, %s212
      %s214 = sphi 0, %s212
      %s215 = sphi 0, %s214
      %s229 = sphi 0, %s215
      %s233 = sphi 0, %s233
      %s235 = sphi 0, %s233
      %s236 = sphi 0, %s235
      %s250 = sphi 0, %s236
      %s254 = sphi 0, %s254
      %s256 = sphi 0, %s254
      %s257 = sphi 0, %s256
      %s271 = sphi 0, %s257
      %s275 = sphi 0, %s275
      %s277 = sphi 0, %s275
      %s278 = sphi 0, %s277
      %s292 = sphi 0, %s278
      %s296 = sphi 0, %s296
      %s298 = sphi 0, %s296
      %s299 = sphi 0, %s298
      %s313 = sphi 0, %s299
      %s317 = sphi 0, %s317
      %s319 = sphi 0, %s317
      %s320 = sphi 0, %s319
      %s334 = sphi 0, %s320
      %s338 = sphi 0, %s338
      %s340 = sphi 0, %s338
      %s341 = sphi 0, %s340
      %s355 = sphi 0, %s341
      %s359 = sphi 0, %s359
      %s361 = sphi 0, %s359
      %s362 = sphi 0, %s361
      %s376 = sphi 0, %s362
      %s380 = sphi 0, %s380
      %s382 = sphi 0, %s380
      %s383 = sphi 0, %s382
      %s397 = sphi 0, %s383
      %s401 = sphi 0, %s401
      %s403 = sphi 0, %s401
      %s404 = sphi 0, %s403
      %s418 = sphi 0, %s404
      %s424 = sphi 0, %s426
      %s427 = sphi 0, %s424
      %s428 = sphi 0, %s427
      %s444 = sphi 0, %s428
    $region4: #{tpu_custom_call.1} parent=1 // loop_header_branch
      %29 = sbr.rel (%p27) target = $region8
    $region5: #{tpu_custom_call.1} parent=1 // loop_body
      %s31 = ssub.s32 %s26, 1
      %s32 = ssub.s32 %s26, 2
      %s39 = sadd.s32 1, %s34
      %p40 = scmp.ge.s32.totalorder %s39, 4
      %s41 = scalar_select %p40, 0, %s39
      %s42 = sadd.s32 1, %s33
      %s43 = scalar_select %p40, %s42, %s33
      %p44 = scmp.ge.s32.totalorder %s43, 2
      %s45 = scalar_select %p44, 0, %s43
      %s46 = ssub.s32 %s33, %s45
      %s47 = ssub.s32 %s34, %s41
      %s48 = sor.u32 %s46, %s47
      %p49 = scmp.eq.s32.totalorder %s48, 0
      %s51 = sadd.s32 %s50, 1
      %s52 = scalar_select %p49, %s50, %s51
      %p55 = pneg %p49
      %p56 = scmp.eq.s32.totalorder %s26, 7
      %p57 = por %p55, %p56
      %p58 = scmp.ne.s32.totalorder %s50, %s53
      %p59 = scmp.eq.s32.totalorder %s26, 0
      %p60 = por %p58, %p59
      %p61 = scmp.ne.s32.totalorder %s50, %s53
      %p62 = scmp.eq.s32.totalorder %s31, 7
      %p63 = por %p61, %p62
      %p64 = scmp.ne.s32.totalorder %s53, %s54
      %p65 = scmp.eq.s32.totalorder %s31, 0
      %p66 = por %p64, %p65
      %p67 = scmp.ne.s32.totalorder %s53, %s54
      %p68 = scmp.eq.s32.totalorder %s32, 7
      %p69 = por %p67, %p68
      %p71 = scmp.ne.s32.totalorder %s54, %s70
      %p72 = scmp.eq.s32.totalorder %s32, 0
      %p73 = por %p71, %p72
      %s74 = ssub.s32 %s33, %s45
      %s75 = ssub.s32 %s34, %s41
      %s76 = sor.u32 %s74, %s75
      %p77 = scmp.eq.s32.totalorder %s76, 0
      %s79 = sadd.s32 %s78, 1
      %s80 = scalar_select %p77, %s78, %s79
      %p83 = pneg %p77
      %p84 = scmp.eq.s32.totalorder %s26, 7
      %p85 = por %p83, %p84
      %p86 = scmp.ne.s32.totalorder %s78, %s81
      %p87 = scmp.eq.s32.totalorder %s26, 0
      %p88 = por %p86, %p87
      %p89 = scmp.ne.s32.totalorder %s78, %s81
      %p90 = scmp.eq.s32.totalorder %s31, 7
      %p91 = por %p89, %p90
      %p92 = scmp.ne.s32.totalorder %s81, %s82
      %p93 = scmp.eq.s32.totalorder %s31, 0
      %p94 = por %p92, %p93
      %p95 = scmp.ne.s32.totalorder %s81, %s82
      %p96 = scmp.eq.s32.totalorder %s32, 7
      %p97 = por %p95, %p96
      %p99 = scmp.ne.s32.totalorder %s82, %s98
      %p100 = scmp.eq.s32.totalorder %s32, 0
      %p101 = por %p99, %p100
      %s102 = ssub.s32 %s33, %s45
      %p103 = scmp.eq.s32.totalorder %s102, 0
      %s105 = sadd.s32 %s104, 1
      %s106 = scalar_select %p103, %s104, %s105
      %p109 = pneg %p103
      %p110 = scmp.eq.s32.totalorder %s26, 7
      %p111 = por %p109, %p110
      %p112 = scmp.ne.s32.totalorder %s104, %s107
      %p113 = scmp.eq.s32.totalorder %s26, 0
      %p114 = por %p112, %p113
      %p115 = scmp.ne.s32.totalorder %s104, %s107
      %p116 = scmp.eq.s32.totalorder %s31, 7
      %p117 = por %p115, %p116
      %p118 = scmp.ne.s32.totalorder %s107, %s108
      %p119 = scmp.eq.s32.totalorder %s31, 0
      %p120 = por %p118, %p119
      %p121 = scmp.ne.s32.totalorder %s107, %s108
      %p122 = scmp.eq.s32.totalorder %s32, 7
      %p123 = por %p121, %p122
      %p125 = scmp.ne.s32.totalorder %s108, %s124
      %p126 = scmp.eq.s32.totalorder %s32, 0
      %p127 = por %p125, %p126
      %s129 = sadd.s32 %s128, 1
      %p132 = scmp.eq.s32.totalorder %s26, 7
      %p133 = scmp.ne.s32.totalorder %s128, %s130
      %p134 = scmp.eq.s32.totalorder %s26, 0
      %p135 = por %p133, %p134
      %p136 = scmp.ne.s32.totalorder %s128, %s130
      %p137 = scmp.eq.s32.totalorder %s31, 7
      %p138 = por %p136, %p137
      %p139 = scmp.ne.s32.totalorder %s130, %s131
      %p140 = scmp.eq.s32.totalorder %s31, 0
      %p141 = por %p139, %p140
      %p142 = scmp.ne.s32.totalorder %s130, %s131
      %p143 = scmp.eq.s32.totalorder %s32, 7
      %p144 = por %p142, %p143
      %p146 = scmp.ne.s32.totalorder %s131, %s145
      %p147 = scmp.eq.s32.totalorder %s32, 0
      %p148 = por %p146, %p147
      %s150 = sadd.s32 %s149, 1
      %p153 = scmp.eq.s32.totalorder %s26, 7
      %p154 = scmp.ne.s32.totalorder %s149, %s151
      %p155 = scmp.eq.s32.totalorder %s26, 0
      %p156 = por %p154, %p155
      %p157 = scmp.ne.s32.totalorder %s149, %s151
      %p158 = scmp.eq.s32.totalorder %s31, 7
      %p159 = por %p157, %p158
      %p160 = scmp.ne.s32.totalorder %s151, %s152
      %p161 = scmp.eq.s32.totalorder %s31, 0
      %p162 = por %p160, %p161
      %p163 = scmp.ne.s32.totalorder %s151, %s152
      %p164 = scmp.eq.s32.totalorder %s32, 7
      %p165 = por %p163, %p164
      %p167 = scmp.ne.s32.totalorder %s152, %s166
      %p168 = scmp.eq.s32.totalorder %s32, 0
      %p169 = por %p167, %p168
      %s171 = sadd.s32 %s170, 1
      %p174 = scmp.eq.s32.totalorder %s26, 7
      %p175 = scmp.ne.s32.totalorder %s170, %s172
      %p176 = scmp.eq.s32.totalorder %s26, 0
      %p177 = por %p175, %p176
      %p178 = scmp.ne.s32.totalorder %s170, %s172
      %p179 = scmp.eq.s32.totalorder %s31, 7
      %p180 = por %p178, %p179
      %p181 = scmp.ne.s32.totalorder %s172, %s173
      %p182 = scmp.eq.s32.totalorder %s31, 0
      %p183 = por %p181, %p182
      %p184 = scmp.ne.s32.totalorder %s172, %s173
      %p185 = scmp.eq.s32.totalorder %s32, 7
      %p186 = por %p184, %p185
      %p188 = scmp.ne.s32.totalorder %s173, %s187
      %p189 = scmp.eq.s32.totalorder %s32, 0
      %p190 = por %p188, %p189
      %s192 = sadd.s32 %s191, 1
      %p195 = scmp.eq.s32.totalorder %s26, 7
      %p196 = scmp.ne.s32.totalorder %s191, %s193
      %p197 = scmp.eq.s32.totalorder %s26, 0
      %p198 = por %p196, %p197
      %p199 = scmp.ne.s32.totalorder %s191, %s193
      %p200 = scmp.eq.s32.totalorder %s31, 7
      %p201 = por %p199, %p200
      %p202 = scmp.ne.s32.totalorder %s193, %s194
      %p203 = scmp.eq.s32.totalorder %s31, 0
      %p204 = por %p202, %p203
      %p205 = scmp.ne.s32.totalorder %s193, %s194
      %p206 = scmp.eq.s32.totalorder %s32, 7
      %p207 = por %p205, %p206
      %p209 = scmp.ne.s32.totalorder %s194, %s208
      %p210 = scmp.eq.s32.totalorder %s32, 0
      %p211 = por %p209, %p210
      %s213 = sadd.s32 %s212, 1
      %p216 = scmp.eq.s32.totalorder %s26, 7
      %p217 = scmp.ne.s32.totalorder %s212, %s214
      %p218 = scmp.eq.s32.totalorder %s26, 0
      %p219 = por %p217, %p218
      %p220 = scmp.ne.s32.totalorder %s212, %s214
      %p221 = scmp.eq.s32.totalorder %s31, 7
      %p222 = por %p220, %p221
      %p223 = scmp.ne.s32.totalorder %s214, %s215
      %p224 = scmp.eq.s32.totalorder %s31, 0
      %p225 = por %p223, %p224
      %p226 = scmp.ne.s32.totalorder %s214, %s215
      %p227 = scmp.eq.s32.totalorder %s32, 7
      %p228 = por %p226, %p227
      %p230 = scmp.ne.s32.totalorder %s215, %s229
      %p231 = scmp.eq.s32.totalorder %s32, 0
      %p232 = por %p230, %p231
      %s234 = sadd.s32 %s233, 1
      %p237 = scmp.eq.s32.totalorder %s26, 7
      %p238 = scmp.ne.s32.totalorder %s233, %s235
      %p239 = scmp.eq.s32.totalorder %s26, 0
      %p240 = por %p238, %p239
      %p241 = scmp.ne.s32.totalorder %s233, %s235
      %p242 = scmp.eq.s32.totalorder %s31, 7
      %p243 = por %p241, %p242
      %p244 = scmp.ne.s32.totalorder %s235, %s236
      %p245 = scmp.eq.s32.totalorder %s31, 0
      %p246 = por %p244, %p245
      %p247 = scmp.ne.s32.totalorder %s235, %s236
      %p248 = scmp.eq.s32.totalorder %s32, 7
      %p249 = por %p247, %p248
      %p251 = scmp.ne.s32.totalorder %s236, %s250
      %p252 = scmp.eq.s32.totalorder %s32, 0
      %p253 = por %p251, %p252
      %s255 = sadd.s32 %s254, 1
      %p258 = scmp.eq.s32.totalorder %s26, 7
      %p259 = scmp.ne.s32.totalorder %s254, %s256
      %p260 = scmp.eq.s32.totalorder %s26, 0
      %p261 = por %p259, %p260
      %p262 = scmp.ne.s32.totalorder %s254, %s256
      %p263 = scmp.eq.s32.totalorder %s31, 7
      %p264 = por %p262, %p263
      %p265 = scmp.ne.s32.totalorder %s256, %s257
      %p266 = scmp.eq.s32.totalorder %s31, 0
      %p267 = por %p265, %p266
      %p268 = scmp.ne.s32.totalorder %s256, %s257
      %p269 = scmp.eq.s32.totalorder %s32, 7
      %p270 = por %p268, %p269
      %p272 = scmp.ne.s32.totalorder %s257, %s271
      %p273 = scmp.eq.s32.totalorder %s32, 0
      %p274 = por %p272, %p273
      %s276 = sadd.s32 %s275, 1
      %p279 = scmp.eq.s32.totalorder %s26, 7
      %p280 = scmp.ne.s32.totalorder %s275, %s277
      %p281 = scmp.eq.s32.totalorder %s26, 0
      %p282 = por %p280, %p281
      %p283 = scmp.ne.s32.totalorder %s275, %s277
      %p284 = scmp.eq.s32.totalorder %s31, 7
      %p285 = por %p283, %p284
      %p286 = scmp.ne.s32.totalorder %s277, %s278
      %p287 = scmp.eq.s32.totalorder %s31, 0
      %p288 = por %p286, %p287
      %p289 = scmp.ne.s32.totalorder %s277, %s278
      %p290 = scmp.eq.s32.totalorder %s32, 7
      %p291 = por %p289, %p290
      %p293 = scmp.ne.s32.totalorder %s278, %s292
      %p294 = scmp.eq.s32.totalorder %s32, 0
      %p295 = por %p293, %p294
      %s297 = sadd.s32 %s296, 1
      %p300 = scmp.eq.s32.totalorder %s26, 7
      %p301 = scmp.ne.s32.totalorder %s296, %s298
      %p302 = scmp.eq.s32.totalorder %s26, 0
      %p303 = por %p301, %p302
      %p304 = scmp.ne.s32.totalorder %s296, %s298
      %p305 = scmp.eq.s32.totalorder %s31, 7
      %p306 = por %p304, %p305
      %p307 = scmp.ne.s32.totalorder %s298, %s299
      %p308 = scmp.eq.s32.totalorder %s31, 0
      %p309 = por %p307, %p308
      %p310 = scmp.ne.s32.totalorder %s298, %s299
      %p311 = scmp.eq.s32.totalorder %s32, 7
      %p312 = por %p310, %p311
      %p314 = scmp.ne.s32.totalorder %s299, %s313
      %p315 = scmp.eq.s32.totalorder %s32, 0
      %p316 = por %p314, %p315
      %s318 = sadd.s32 %s317, 1
      %p321 = scmp.eq.s32.totalorder %s26, 7
      %p322 = scmp.ne.s32.totalorder %s317, %s319
      %p323 = scmp.eq.s32.totalorder %s26, 0
      %p324 = por %p322, %p323
      %p325 = scmp.ne.s32.totalorder %s317, %s319
      %p326 = scmp.eq.s32.totalorder %s31, 7
      %p327 = por %p325, %p326
      %p328 = scmp.ne.s32.totalorder %s319, %s320
      %p329 = scmp.eq.s32.totalorder %s31, 0
      %p330 = por %p328, %p329
      %p331 = scmp.ne.s32.totalorder %s319, %s320
      %p332 = scmp.eq.s32.totalorder %s32, 7
      %p333 = por %p331, %p332
      %p335 = scmp.ne.s32.totalorder %s320, %s334
      %p336 = scmp.eq.s32.totalorder %s32, 0
      %p337 = por %p335, %p336
      %s339 = sadd.s32 %s338, 1
      %p342 = scmp.eq.s32.totalorder %s26, 7
      %p343 = scmp.ne.s32.totalorder %s338, %s340
      %p344 = scmp.eq.s32.totalorder %s26, 0
      %p345 = por %p343, %p344
      %p346 = scmp.ne.s32.totalorder %s338, %s340
      %p347 = scmp.eq.s32.totalorder %s31, 7
      %p348 = por %p346, %p347
      %p349 = scmp.ne.s32.totalorder %s340, %s341
      %p350 = scmp.eq.s32.totalorder %s31, 0
      %p351 = por %p349, %p350
      %p352 = scmp.ne.s32.totalorder %s340, %s341
      %p353 = scmp.eq.s32.totalorder %s32, 7
      %p354 = por %p352, %p353
      %p356 = scmp.ne.s32.totalorder %s341, %s355
      %p357 = scmp.eq.s32.totalorder %s32, 0
      %p358 = por %p356, %p357
      %s360 = sadd.s32 %s359, 1
      %p363 = scmp.eq.s32.totalorder %s26, 7
      %p364 = scmp.ne.s32.totalorder %s359, %s361
      %p365 = scmp.eq.s32.totalorder %s26, 0
      %p366 = por %p364, %p365
      %p367 = scmp.ne.s32.totalorder %s359, %s361
      %p368 = scmp.eq.s32.totalorder %s31, 7
      %p369 = por %p367, %p368
      %p370 = scmp.ne.s32.totalorder %s361, %s362
      %p371 = scmp.eq.s32.totalorder %s31, 0
      %p372 = por %p370, %p371
      %p373 = scmp.ne.s32.totalorder %s361, %s362
      %p374 = scmp.eq.s32.totalorder %s32, 7
      %p375 = por %p373, %p374
      %p377 = scmp.ne.s32.totalorder %s362, %s376
      %p378 = scmp.eq.s32.totalorder %s32, 0
      %p379 = por %p377, %p378
      %s381 = sadd.s32 %s380, 1
      %p384 = scmp.eq.s32.totalorder %s26, 7
      %p385 = scmp.ne.s32.totalorder %s380, %s382
      %p386 = scmp.eq.s32.totalorder %s26, 0
      %p387 = por %p385, %p386
      %p388 = scmp.ne.s32.totalorder %s380, %s382
      %p389 = scmp.eq.s32.totalorder %s31, 7
      %p390 = por %p388, %p389
      %p391 = scmp.ne.s32.totalorder %s382, %s383
      %p392 = scmp.eq.s32.totalorder %s31, 0
      %p393 = por %p391, %p392
      %p394 = scmp.ne.s32.totalorder %s382, %s383
      %p395 = scmp.eq.s32.totalorder %s32, 7
      %p396 = por %p394, %p395
      %p398 = scmp.ne.s32.totalorder %s383, %s397
      %p399 = scmp.eq.s32.totalorder %s32, 0
      %p400 = por %p398, %p399
      %s402 = sadd.s32 %s401, 1
      %p405 = scmp.eq.s32.totalorder %s26, 7
      %p406 = scmp.ne.s32.totalorder %s401, %s403
      %p407 = scmp.eq.s32.totalorder %s26, 0
      %p408 = por %p406, %p407
      %p409 = scmp.ne.s32.totalorder %s401, %s403
      %p410 = scmp.eq.s32.totalorder %s31, 7
      %p411 = por %p409, %p410
      %p412 = scmp.ne.s32.totalorder %s403, %s404
      %p413 = scmp.eq.s32.totalorder %s31, 0
      %p414 = por %p412, %p413
      %p415 = scmp.ne.s32.totalorder %s403, %s404
      %p416 = scmp.eq.s32.totalorder %s32, 7
      %p417 = por %p415, %p416
      %p419 = scmp.ne.s32.totalorder %s404, %s418
      %p420 = scmp.eq.s32.totalorder %s32, 0
      %p421 = por %p419, %p420
      %s422 = ssub.s32 %s33, %s45
      %p423 = scmp.eq.s32.totalorder %s422, 0
      %s425 = sadd.s32 %s424, 1
      %s426 = scalar_select %p423, %s424, %s425
      %p429 = pneg %p423
      %p430 = scmp.eq.s32.totalorder %s26, 7
      %p431 = por %p429, %p430
      %p432 = scmp.ne.s32.totalorder %s424, %s427
      %p433 = scmp.eq.s32.totalorder %s26, 0
      %p434 = por %p432, %p433
      %p435 = scmp.ne.s32.totalorder %s424, %s427
      %p436 = scmp.eq.s32.totalorder %s31, 7
      %p437 = por %p435, %p436
      %p438 = scmp.ne.s32.totalorder %s427, %s428
      %p439 = scmp.eq.s32.totalorder %s31, 0
      %p440 = por %p438, %p439
      %p441 = scmp.ne.s32.totalorder %s427, %s428
      %p442 = scmp.eq.s32.totalorder %s32, 7
      %p443 = por %p441, %p442
      %p445 = scmp.ne.s32.totalorder %s428, %s444
      %p446 = scmp.eq.s32.totalorder %s32, 0
      %p447 = por %p445, %p446
      %p448 = scmp.le.s32.totalorder 1, %s26
      %p449 = scmp.lt.s32.totalorder %s26, 9
      %p450 = pnand %p448, %p449
      %p451 = pneg %p450
      // Predicated region
      $region9: #{tpu_custom_call.1} parent=5 // pred_check
        _
      $region10: #{tpu_custom_call.1} parent=5 // pred_check_branch
        %453 = sbr.rel (%p450) target = $region12
      $region11: #{tpu_custom_call.1} parent=5 // pred_region
        %s454 = ssub.s32 %s26, 1
        // Predicated region
        $region13: #{tpu_custom_call.1} parent=11 // pred_check
          %p455 = pneg %p141
        $region14: #{tpu_custom_call.1} parent=11 // pred_check_branch
          %457 = sbr.rel (%p455) target = $region16
        $region15: #{tpu_custom_call.1} parent=11 // pred_region
          _
        $region16: #{tpu_custom_call.1} parent=11 // pred_fallthru
          _
        // Predicated region
        $region17: #{tpu_custom_call.1} parent=11 // pred_check
          %p458 = pneg %p162
        $region18: #{tpu_custom_call.1} parent=11 // pred_check_branch
          %460 = sbr.rel (%p458) target = $region20
        $region19: #{tpu_custom_call.1} parent=11 // pred_region
          _
        $region20: #{tpu_custom_call.1} parent=11 // pred_fallthru
          _
        // Predicated region
        $region21: #{tpu_custom_call.1} parent=11 // pred_check
          %p461 = pneg %p183
        $region22: #{tpu_custom_call.1} parent=11 // pred_check_branch
          %463 = sbr.rel (%p461) target = $region24
        $region23: #{tpu_custom_call.1} parent=11 // pred_region
          _
        $region24: #{tpu_custom_call.1} parent=11 // pred_fallthru
          _
        // Predicated region
        $region25: #{tpu_custom_call.1} parent=11 // pred_check
          %p464 = pneg %p204
        $region26: #{tpu_custom_call.1} parent=11 // pred_check_branch
          %466 = sbr.rel (%p464) target = $region28
        $region27: #{tpu_custom_call.1} parent=11 // pred_region
          _
        $region28: #{tpu_custom_call.1} parent=11 // pred_fallthru
          _
        // Predicated region
        $region29: #{tpu_custom_call.1} parent=11 // pred_check
          %p467 = pneg %p225
        $region30: #{tpu_custom_call.1} parent=11 // pred_check_branch
          %469 = sbr.rel (%p467) target = $region32
        $region31: #{tpu_custom_call.1} parent=11 // pred_region
          _
        $region32: #{tpu_custom_call.1} parent=11 // pred_fallthru
          _
        // Predicated region
        $region33: #{tpu_custom_call.1} parent=11 // pred_check
          %p470 = pneg %p246
        $region34: #{tpu_custom_call.1} parent=11 // pred_check_branch
          %472 = sbr.rel (%p470) target = $region36
        $region35: #{tpu_custom_call.1} parent=11 // pred_region
          _
        $region36: #{tpu_custom_call.1} parent=11 // pred_fallthru
          _
        // Predicated region
        $region37: #{tpu_custom_call.1} parent=11 // pred_check
          %p473 = pneg %p267
        $region38: #{tpu_custom_call.1} parent=11 // pred_check_branch
          %475 = sbr.rel (%p473) target = $region40
        $region39: #{tpu_custom_call.1} parent=11 // pred_region
          _
        $region40: #{tpu_custom_call.1} parent=11 // pred_fallthru
          _
        // Predicated region
        $region41: #{tpu_custom_call.1} parent=11 // pred_check
          %p476 = pneg %p288
        $region42: #{tpu_custom_call.1} parent=11 // pred_check_branch
          %478 = sbr.rel (%p476) target = $region44
        $region43: #{tpu_custom_call.1} parent=11 // pred_region
          _
        $region44: #{tpu_custom_call.1} parent=11 // pred_fallthru
          _
        // Predicated region
        $region45: #{tpu_custom_call.1} parent=11 // pred_check
          %p479 = pneg %p309
        $region46: #{tpu_custom_call.1} parent=11 // pred_check_branch
          %481 = sbr.rel (%p479) target = $region48
        $region47: #{tpu_custom_call.1} parent=11 // pred_region
          _
        $region48: #{tpu_custom_call.1} parent=11 // pred_fallthru
          _
        // Predicated region
        $region49: #{tpu_custom_call.1} parent=11 // pred_check
          %p482 = pneg %p330
        $region50: #{tpu_custom_call.1} parent=11 // pred_check_branch
          %484 = sbr.rel (%p482) target = $region52
        $region51: #{tpu_custom_call.1} parent=11 // pred_region
          _
        $region52: #{tpu_custom_call.1} parent=11 // pred_fallthru
          _
        // Predicated region
        $region53: #{tpu_custom_call.1} parent=11 // pred_check
          %p485 = pneg %p351
        $region54: #{tpu_custom_call.1} parent=11 // pred_check_branch
          %487 = sbr.rel (%p485) target = $region56
        $region55: #{tpu_custom_call.1} parent=11 // pred_region
          _
        $region56: #{tpu_custom_call.1} parent=11 // pred_fallthru
          _
        // Predicated region
        $region57: #{tpu_custom_call.1} parent=11 // pred_check
          %p488 = pneg %p372
        $region58: #{tpu_custom_call.1} parent=11 // pred_check_branch
          %490 = sbr.rel (%p488) target = $region60
        $region59: #{tpu_custom_call.1} parent=11 // pred_region
          _
        $region60: #{tpu_custom_call.1} parent=11 // pred_fallthru
          _
        // Predicated region
        $region61: #{tpu_custom_call.1} parent=11 // pred_check
          %p491 = pneg %p393
        $region62: #{tpu_custom_call.1} parent=11 // pred_check_branch
          %493 = sbr.rel (%p491) target = $region64
        $region63: #{tpu_custom_call.1} parent=11 // pred_region
          _
        $region64: #{tpu_custom_call.1} parent=11 // pred_fallthru
          _
        // Predicated region
        $region65: #{tpu_custom_call.1} parent=11 // pred_check
          %p494 = pneg %p414
        $region66: #{tpu_custom_call.1} parent=11 // pred_check_branch
          %496 = sbr.rel (%p494) target = $region68
        $region67: #{tpu_custom_call.1} parent=11 // pred_region
          _
        $region68: #{tpu_custom_call.1} parent=11 // pred_fallthru
          _
      $region12: #{tpu_custom_call.1} parent=5 // pred_fallthru
        _
      %p497 = scmp.lt.s32.totalorder %s26, 8
      // Predicated region
      $region69: #{tpu_custom_call.1} parent=5 // pred_check
        %p498 = pneg %p497
      $region70: #{tpu_custom_call.1} parent=5 // pred_check_branch
        %500 = sbr.rel (%p498) target = $region72
      $region71: #{tpu_custom_call.1} parent=5 // pred_region
        // Predicated region
        $region73: #{tpu_custom_call.1} parent=71 // pred_check
          %p501 = pneg %p60
        $region74: #{tpu_custom_call.1} parent=71 // pred_check_branch
          %503 = sbr.rel (%p501) target = $region76
        $region75: #{tpu_custom_call.1} parent=71 // pred_region
          %s504 = smul.u32 16, %s34
          %p505 = scmp.lt.s32.totalorder %s33, 1
          %s506 = scalar_select %p505, %s33, 1
          %p507 = scmp.lt.s32.totalorder %s504, 63
          %s508 = scalar_select %p507, %s504, 63
          %s509 = smul.addr %s506, 64
          %s510 = sadd.s32 %s508, %s509
          %s511 = smul.addr %s510, 4
          %s512 = scalar_lea.vmem %s0, %s511
          %s513 = smul.u32 16, %s34
        $region76: #{tpu_custom_call.1} parent=71 // pred_fallthru
          _
        // Predicated region
        $region77: #{tpu_custom_call.1} parent=71 // pred_check
          %p514 = pneg %p88
        $region78: #{tpu_custom_call.1} parent=71 // pred_check_branch
          %516 = sbr.rel (%p514) target = $region80
        $region79: #{tpu_custom_call.1} parent=71 // pred_region
          %p517 = scmp.lt.s32.totalorder %s33, 1
          %s518 = scalar_select %p517, %s33, 1
          %p519 = scmp.lt.s32.totalorder %s34, 3
          %s520 = scalar_select %p519, %s34, 3
          %s521 = smul.addr %s518, 4
          %s522 = sadd.s32 %s520, %s521
          %s523 = scalar_lea.vmem %s1, %s522
        $region80: #{tpu_custom_call.1} parent=71 // pred_fallthru
          _
        // Predicated region
        $region81: #{tpu_custom_call.1} parent=71 // pred_check
          %p524 = pneg %p114
        $region82: #{tpu_custom_call.1} parent=71 // pred_check_branch
          %526 = sbr.rel (%p524) target = $region84
        $region83: #{tpu_custom_call.1} parent=71 // pred_region
          %p527 = scmp.lt.s32.totalorder %s33, 1
          %s528 = scalar_select %p527, %s33, 1
          %s529 = scalar_lea.vmem %s2, %s528
        $region84: #{tpu_custom_call.1} parent=71 // pred_fallthru
          _
      $region72: #{tpu_custom_call.1} parent=5 // pred_fallthru
        _
      %p530 = scmp.le.s32.totalorder 1, %s26
      %p531 = scmp.lt.s32.totalorder %s26, 9
      %p532 = pnand %p530, %p531
      %p533 = pneg %p532
      // Predicated region
      $region85: #{tpu_custom_call.1} parent=5 // pred_check
        _
      $region86: #{tpu_custom_call.1} parent=5 // pred_check_branch
        %535 = sbr.rel (%p532) target = $region88
      $region87: #{tpu_custom_call.1} parent=5 // pred_region
        %s536 = ssub.s32 %s26, 1
        %s537 = smul.u32 16, %s36
        %p538 = scmp.lt.s32.totalorder %s35, 1
        %s539 = scalar_select %p538, %s35, 1
        %p540 = scmp.lt.s32.totalorder %s537, 63
        %s541 = scalar_select %p540, %s537, 63
        %s542 = smul.addr %s539, 64
        %s543 = sadd.s32 %s541, %s542
        %s544 = smul.addr %s543, 4
        %s545 = scalar_lea.vmem %s0, %s544
        %p546 = pneg %p66
        %p547 = pneg %p63
        %p548 = scmp.lt.s32.totalorder %s35, 1
        %s549 = scalar_select %p548, %s35, 1
        %p550 = scmp.lt.s32.totalorder %s36, 3
        %s551 = scalar_select %p550, %s36, 3
        %s552 = smul.addr %s549, 4
        %s553 = sadd.s32 %s551, %s552
        %s554 = scalar_lea.vmem %s1, %s553
        %p555 = pneg %p94
        %p556 = pneg %p91
        %p557 = scmp.lt.s32.totalorder %s35, 1
        %s558 = scalar_select %p557, %s35, 1
        %s559 = scalar_lea.vmem %s2, %s558
        %p560 = pneg %p120
        %p561 = pneg %p117
        %p562 = pneg %p141
        %p563 = pneg %p138
        %p564 = pneg %p162
        %p565 = pneg %p159
        %p566 = pneg %p183
        %p567 = pneg %p180
        %p568 = pneg %p204
        %p569 = pneg %p201
        %p570 = pneg %p225
        %p571 = pneg %p222
        %p572 = pneg %p246
        %p573 = pneg %p243
        %p574 = pneg %p267
        %p575 = pneg %p264
        %p576 = pneg %p288
        %p577 = pneg %p285
        %p578 = pneg %p309
        %p579 = pneg %p306
        %p580 = pneg %p330
        %p581 = pneg %p327
        %p582 = pneg %p351
        %p583 = pneg %p348
        %p584 = pneg %p372
        %p585 = pneg %p369
        %p586 = pneg %p393
        %p587 = pneg %p390
        %p588 = pneg %p414
        %p589 = pneg %p411
        %p590 = pneg %p440
        %p591 = pneg %p437
        %s592 = sand.u32 %s427, 1
        %s593 = scalar_lea.sflag [#allocation5], %s592
        %s594 = sand.u32 %s427, 1
        %s595 = scalar_lea.vmem [#allocation4], %s594
        %s596 = smul.u32 16, %s36
        %p597 = scmp.lt.s32.totalorder %s35, 1
        %s598 = scalar_select %p597, %s35, 1
        %p599 = scmp.lt.s32.totalorder %s596, 63
        %s600 = scalar_select %p599, %s596, 63
        %s601 = smul.addr %s598, 64
        %s602 = sadd.s32 %s600, %s601
        %s603 = smul.addr %s602, 4
        %s604 = scalar_lea.vmem %s0, %s603
        %s605 = smul.u32 16, %s36
        %p606 = scmp.lt.s32.totalorder %s35, 1
        %s607 = scalar_select %p606, %s35, 1
        %p608 = scmp.lt.s32.totalorder %s36, 3
        %s609 = scalar_select %p608, %s36, 3
        %s610 = smul.addr %s607, 4
        %s611 = sadd.s32 %s609, %s610
        %s612 = scalar_lea.vmem %s1, %s611
        %p613 = scmp.lt.s32.totalorder %s35, 1
        %s614 = scalar_select %p613, %s35, 1
        %s615 = scalar_lea.vmem %s2, %s614
        %p617 = scmp.eq.s32.totalorder %s36, 0
        // Predicated region
        $region89: #{tpu_custom_call.1} parent=87 // pred_check
          %p618 = pneg %p617
        $region90: #{tpu_custom_call.1} parent=87 // pred_check_branch
          %620 = sbr.rel (%p618) target = $region92
        $region91: #{tpu_custom_call.1} parent=87 // pred_region
          %vm621 = vcmask 253952
          %622 = vst.msk [vmem:[#allocation2] sm:$0x1] %vm621, 0.0
          %vm623 = vcmask 0
          %624 = vst.msk [vmem:[#allocation3] sm:$0x1] %vm623, 0.0
        $region92: #{tpu_custom_call.1} parent=87 // pred_fallthru
          _
        %v625 = vld [vmem:[%s612] sm:$0x1]
        %v626 = vld [vmem:[#allocation2] sm:$0x1]
        %v627 = vld [vmem:[%s604] sm:$0xf]
        %v628 = vld [vmem:[%s604 + $0x4] sm:$0xf]
        %v629 = vld [vmem:[%s604 + $0x8] sm:$0xf]
        %v630 = vld [vmem:[%s604 + $0xc] sm:$0xf]
        %v631 = vld [vmem:[%s604 + $0x10] sm:$0xf]
        %v632 = vld [vmem:[%s604 + $0x14] sm:$0xf]
        %v633 = vld [vmem:[%s604 + $0x18] sm:$0xf]
        %v634 = vld [vmem:[%s604 + $0x1c] sm:$0xf]
        %v635 = vld [vmem:[%s604 + $0x20] sm:$0xf]
        %v636 = vld [vmem:[%s604 + $0x24] sm:$0xf]
        %v637 = vld [vmem:[%s604 + $0x28] sm:$0xf]
        %v638 = vld [vmem:[%s604 + $0x2c] sm:$0xf]
        %v639 = vld [vmem:[%s604 + $0x30] sm:$0xf]
        %v640 = vld [vmem:[%s604 + $0x34] sm:$0xf]
        %v641 = vld [vmem:[%s604 + $0x38] sm:$0xf]
        %v642 = vld [vmem:[%s604 + $0x3c] sm:$0xf]
        %v659 = vunpack.c.l.b16 %v627
        %v660 = vunpack.c.l.b16 %v628
        %v661 = vunpack.c.l.b16 %v629
        %v662 = vunpack.c.l.b16 %v630
        %v663 = vunpack.c.l.b16 %v631
        %v664 = vunpack.c.l.b16 %v632
        %v665 = vunpack.c.l.b16 %v633
        %v666 = vunpack.c.l.b16 %v634
        %v667 = vunpack.c.l.b16 %v635
        %v668 = vunpack.c.l.b16 %v636
        %v669 = vunpack.c.l.b16 %v637
        %v670 = vunpack.c.l.b16 %v638
        %v671 = vunpack.c.l.b16 %v639
        %v672 = vunpack.c.l.b16 %v640
        %v673 = vunpack.c.l.b16 %v641
        %v674 = vunpack.c.l.b16 %v642
        %v675 = vpack.c.b16 %v660, %v659
        %v676 = vpack.c.b16 %v662, %v661
        %v677 = vpack.c.b16 %v664, %v663
        %v678 = vpack.c.b16 %v666, %v665
        %v679 = vpack.c.b16 %v668, %v667
        %v680 = vpack.c.b16 %v670, %v669
        %v681 = vpack.c.b16 %v672, %v671
        %v682 = vpack.c.b16 %v674, %v673
        %691 = vmatprep.subr.bf16.mxu0 0
        %692 = vmatpush1.bf16.msra.mxu0 %v675
        %693 = vmatprep.subr.bf16.mxu0 0
        %694 = vmatpush1.bf16.msra.mxu0 %v676
        %695 = vmatprep.subr.bf16.mxu0 0
        %696 = vmatpush1.bf16.msra.mxu0 %v677
        %697 = vmatprep.subr.bf16.mxu0 0
        %698 = vmatpush1.bf16.msra.mxu0 %v678
        %699 = vmatprep.subr.bf16.mxu0 0
        %700 = vmatpush1.bf16.msra.mxu0 %v679
        %701 = vmatprep.subr.bf16.mxu0 0
        %702 = vmatpush1.bf16.msra.mxu0 %v680
        %703 = vmatprep.subr.bf16.mxu0 0
        %704 = vmatpush1.bf16.msra.mxu0 %v681
        %705 = vmatprep.subr.bf16.mxu0 0
        %706 = vmatpush1.bf16.msra.mxu0 %v682
        %707 = vmatprep.subr.bf16.mxu0 0
        %708 = vmatpush1.bf16.msra.mxu0 0
        %709 = vmatprep.subr.bf16.mxu0 0
        %710 = vmatpush1.bf16.msra.mxu0 0
        %711 = vmatprep.subr.bf16.mxu0 0
        %712 = vmatpush1.bf16.msra.mxu0 0
        %713 = vmatprep.subr.bf16.mxu0 0
        %714 = vmatpush1.bf16.msra.mxu0 0
        %715 = vmatprep.subr.bf16.mxu0 0
        %716 = vmatpush1.bf16.msra.mxu0 0
        %717 = vmatprep.subr.bf16.mxu0 0
        %718 = vmatpush1.bf16.msra.mxu0 0
        %719 = vmatprep.subr.bf16.mxu0 0
        %720 = vmatpush1.bf16.msra.mxu0 0
        %721 = vmatprep.subr.bf16.mxu0 0
        %722 = vmatpush1.bf16.msra.mxu0 0
        %723 = vmatprep.mubr.bf16.mxu0 0
        %724 = vmatmul.mubr.bf16.gmra.mrb[0].mxu0 %v625
        %v725 = vpop.f32.mrb[0].mxu0
        %v726 = vadd.f32 0.0, %v725
        %v727 = vpop.f32.mrb[0].mxu0
        %v728 = vpop.f32.mrb[0].mxu0
        %v729 = vpop.f32.mrb[0].mxu0
        %730 = vdwg.mxu0
        %v731 = vadd.f32 %v626, %v726
        %vm732 = vcmask 253952
        %733 = vst.msk [vmem:[#allocation2] sm:$0x1] %vm732, %v731
        %v734 = vld [vmem:[#allocation3] sm:$0x1]
        %v735 = vunpack.c.l.bf16 %v625
        %vm736 = vcmask 1040384
        %v737 = vsel %vm736, %v735, 0.0
        %738 = vadd.xlane.f32.xlu0 %v737
        %v739 = vpop.xlane.xlu0 %738
        %v740 = vadd.f32 %v734, %v739
        %vm741 = vcmask 0
        %742 = vst.msk [vmem:[#allocation3] sm:$0x1] %vm741, %v740
        %p743 = scmp.eq.s32.totalorder %s36, 3
        // Predicated region
        $region93: #{tpu_custom_call.1} parent=87 // pred_check
          %p744 = pneg %p743
        $region94: #{tpu_custom_call.1} parent=87 // pred_check_branch
          %746 = sbr.rel (%p744) target = $region96
        $region95: #{tpu_custom_call.1} parent=87 // pred_region
          %v747 = vld [vmem:[#allocation3] sm:$0x1]
          %v748 = vmax.f32 %v747, 1e-09
          %v749 = vrcp.pop %v748
          %v750 = vmul.f32 1.0, %v749
          %v751 = vld [vmem:[#allocation2] sm:$0x1]
          %753 = vset.pattern.permute.xlu0 0
          %754 = vperm.xlu0 %753, %v750
          %v755 = vpop.permute.xlu0 %754
          %v757 = vlaneseq
          %v758 = vshrl.u32 %v757, 7
          %v759 = vsub.s32 0, %v758
          %v760 = vrot.slane %v755, %v759
          %v761 = vmul.f32 %v751, %v760
          %v762 = vld [vmem:[%s615] sm:$0x1]
          %v763 = vpack.c.bf16 %v761, %v761
          %v764 = vld [vmem:[%s3] sm:$0xf]
          %v765 = vld [vmem:[%s3 + $0x4] sm:$0xf]
          %v766 = vld [vmem:[%s3 + $0x8] sm:$0xf]
          %v767 = vld [vmem:[%s3 + $0xc] sm:$0xf]
          %v772 = vunpack.c.l.b16 %v764
          %v773 = vunpack.c.l.b16 %v765
          %v774 = vunpack.c.l.b16 %v766
          %v775 = vunpack.c.l.b16 %v767
          %v776 = vpack.c.b16 %v773, %v772
          %v777 = vpack.c.b16 %v775, %v774
          %vm780 = vcmask 261120
          %v782 = vsel %vm780, %v763, 0
          %784 = vmatprep.subr.bf16.mxu0 0
          %785 = vmatpush1.bf16.msra.mxu0 %v776
          %786 = vmatprep.subr.bf16.mxu0 0
          %787 = vmatpush1.bf16.msra.mxu0 %v777
          %788 = vmatprep.subr.bf16.mxu0 0
          %789 = vmatpush1.bf16.msra.mxu0 0
          %790 = vmatprep.subr.bf16.mxu0 0
          %791 = vmatpush1.bf16.msra.mxu0 0
          %792 = vmatprep.subr.bf16.mxu0 0
          %793 = vmatpush1.bf16.msra.mxu0 0
          %794 = vmatprep.subr.bf16.mxu0 0
          %795 = vmatpush1.bf16.msra.mxu0 0
          %796 = vmatprep.subr.bf16.mxu0 0
          %797 = vmatpush1.bf16.msra.mxu0 0
          %798 = vmatprep.subr.bf16.mxu0 0
          %799 = vmatpush1.bf16.msra.mxu0 0
          %800 = vmatprep.subr.bf16.mxu0 0
          %801 = vmatpush1.bf16.msra.mxu0 0
          %802 = vmatprep.subr.bf16.mxu0 0
          %803 = vmatpush1.bf16.msra.mxu0 0
          %804 = vmatprep.subr.bf16.mxu0 0
          %805 = vmatpush1.bf16.msra.mxu0 0
          %806 = vmatprep.subr.bf16.mxu0 0
          %807 = vmatpush1.bf16.msra.mxu0 0
          %808 = vmatprep.subr.bf16.mxu0 0
          %809 = vmatpush1.bf16.msra.mxu0 0
          %810 = vmatprep.subr.bf16.mxu0 0
          %811 = vmatpush1.bf16.msra.mxu0 0
          %812 = vmatprep.subr.bf16.mxu0 0
          %813 = vmatpush1.bf16.msra.mxu0 0
          %814 = vmatprep.subr.bf16.mxu0 0
          %815 = vmatpush1.bf16.msra.mxu0 0
          %816 = vmatprep.mubr.bf16.mxu0 0
          %817 = vmatmul.mubr.bf16.gmra.mrb[0].mxu0 %v782
          %v818 = vpop.f32.mrb[0].mxu0
          %v819 = vadd.f32 0.0, %v818
          %v820 = vpop.f32.mrb[0].mxu0
          %v821 = vpop.f32.mrb[0].mxu0
          %v822 = vpop.f32.mrb[0].mxu0
          %823 = vdwg.mxu0
          %v824 = vpack.c.bf16 %v762, %v762
          %v825 = vld [vmem:[%s4] sm:$0xf]
          %v826 = vld [vmem:[%s4 + $0x4] sm:$0xf]
          %v829 = vunpack.c.l.b16 %v825
          %v830 = vunpack.c.l.b16 %v826
          %v831 = vpack.c.b16 %v830, %v829
          %vm833 = vcmask 130048
          %v835 = vsel %vm833, %v824, 0
          %837 = vmatprep.subr.bf16.mxu0 0
          %838 = vmatpush1.bf16.msra.mxu0 %v831
          %839 = vmatprep.subr.bf16.mxu0 0
          %840 = vmatpush1.bf16.msra.mxu0 0
          %841 = vmatprep.subr.bf16.mxu0 0
          %842 = vmatpush1.bf16.msra.mxu0 0
          %843 = vmatprep.subr.bf16.mxu0 0
          %844 = vmatpush1.bf16.msra.mxu0 0
          %845 = vmatprep.subr.bf16.mxu0 0
          %846 = vmatpush1.bf16.msra.mxu0 0
          %847 = vmatprep.subr.bf16.mxu0 0
          %848 = vmatpush1.bf16.msra.mxu0 0
          %849 = vmatprep.subr.bf16.mxu0 0
          %850 = vmatpush1.bf16.msra.mxu0 0
          %851 = vmatprep.subr.bf16.mxu0 0
          %852 = vmatpush1.bf16.msra.mxu0 0
          %853 = vmatprep.subr.bf16.mxu0 0
          %854 = vmatpush1.bf16.msra.mxu0 0
          %855 = vmatprep.subr.bf16.mxu0 0
          %856 = vmatpush1.bf16.msra.mxu0 0
          %857 = vmatprep.subr.bf16.mxu0 0
          %858 = vmatpush1.bf16.msra.mxu0 0
          %859 = vmatprep.subr.bf16.mxu0 0
          %860 = vmatpush1.bf16.msra.mxu0 0
          %861 = vmatprep.subr.bf16.mxu0 0
          %862 = vmatpush1.bf16.msra.mxu0 0
          %863 = vmatprep.subr.bf16.mxu0 0
          %864 = vmatpush1.bf16.msra.mxu0 0
          %865 = vmatprep.subr.bf16.mxu0 0
          %866 = vmatpush1.bf16.msra.mxu0 0
          %867 = vmatprep.subr.bf16.mxu0 0
          %868 = vmatpush1.bf16.msra.mxu0 0
          %869 = vmatprep.mubr.bf16.mxu0 0
          %870 = vmatmul.mubr.bf16.gmra.mrb[0].mxu0 %v835
          %v871 = vpop.f32.mrb[0].mxu0
          %v872 = vadd.f32 0.0, %v871
          %v873 = vpop.f32.mrb[0].mxu0
          %v874 = vpop.f32.mrb[0].mxu0
          %v875 = vpop.f32.mrb[0].mxu0
          %876 = vdwg.mxu0
          %v877 = vld [vmem:[%s5] sm:$0xf]
          %v878 = vld [vmem:[%s5 + $0x4] sm:$0xf]
          %v879 = vld [vmem:[%s5 + $0x8] sm:$0xf]
          %v880 = vld [vmem:[%s5 + $0xc] sm:$0xf]
          %v881 = vld [vmem:[%s5 + $0x10] sm:$0xf]
          %v882 = vld [vmem:[%s5 + $0x14] sm:$0xf]
          %v883 = vld [vmem:[%s5 + $0x18] sm:$0xf]
          %v884 = vld [vmem:[%s5 + $0x1c] sm:$0xf]
          %v885 = vpack.c.bf16 %v819, %v819
          %v886 = vpack.c.bf16 %v872, %v872
          %v891 = vunpack.c.l.b16 %v881
          %v892 = vunpack.c.l.b16 %v882
          %v893 = vunpack.c.l.b16 %v883
          %v894 = vunpack.c.l.b16 %v884
          %v895 = vpack.c.b16 %v892, %v891
          %v896 = vpack.c.b16 %v894, %v893
          %v900 = vsel %vm780, %v886, 0
          %902 = vmatprep.subr.bf16.mxu0 0
          %903 = vmatpush1.bf16.msra.mxu0 %v895
          %904 = vmatprep.subr.bf16.mxu0 0
          %905 = vmatpush1.bf16.msra.mxu0 %v896
          %906 = vmatprep.subr.bf16.mxu0 0
          %907 = vmatpush1.bf16.msra.mxu0 0
          %908 = vmatprep.subr.bf16.mxu0 0
          %909 = vmatpush1.bf16.msra.mxu0 0
          %910 = vmatprep.subr.bf16.mxu0 0
          %911 = vmatpush1.bf16.msra.mxu0 0
          %912 = vmatprep.subr.bf16.mxu0 0
          %913 = vmatpush1.bf16.msra.mxu0 0
          %914 = vmatprep.subr.bf16.mxu0 0
          %915 = vmatpush1.bf16.msra.mxu0 0
          %916 = vmatprep.subr.bf16.mxu0 0
          %917 = vmatpush1.bf16.msra.mxu0 0
          %918 = vmatprep.subr.bf16.mxu0 0
          %919 = vmatpush1.bf16.msra.mxu0 0
          %920 = vmatprep.subr.bf16.mxu0 0
          %921 = vmatpush1.bf16.msra.mxu0 0
          %922 = vmatprep.subr.bf16.mxu0 0
          %923 = vmatpush1.bf16.msra.mxu0 0
          %924 = vmatprep.subr.bf16.mxu0 0
          %925 = vmatpush1.bf16.msra.mxu0 0
          %926 = vmatprep.subr.bf16.mxu0 0
          %927 = vmatpush1.bf16.msra.mxu0 0
          %928 = vmatprep.subr.bf16.mxu0 0
          %929 = vmatpush1.bf16.msra.mxu0 0
          %930 = vmatprep.subr.bf16.mxu0 0
          %931 = vmatpush1.bf16.msra.mxu0 0
          %932 = vmatprep.subr.bf16.mxu0 0
          %933 = vmatpush1.bf16.msra.mxu0 0
          %934 = vmatprep.mubr.bf16.mxu0 0
          %935 = vmatmul.mubr.bf16.gmra.mrb[0].mxu0 %v900
          %v936 = vpop.f32.mrb[0].mxu0
          %v937 = vadd.f32 0.0, %v936
          %v938 = vpop.f32.mrb[0].mxu0
          %v939 = vpop.f32.mrb[0].mxu0
          %v940 = vpop.f32.mrb[0].mxu0
          %941 = vdwg.mxu0
          %v946 = vunpack.c.l.b16 %v877
          %v947 = vunpack.c.l.b16 %v878
          %v948 = vunpack.c.l.b16 %v879
          %v949 = vunpack.c.l.b16 %v880
          %v950 = vpack.c.b16 %v947, %v946
          %v951 = vpack.c.b16 %v949, %v948
          %v955 = vsel %vm780, %v885, 0
          %957 = vmatprep.subr.bf16.mxu0 0
          %958 = vmatpush1.bf16.msra.mxu0 %v950
          %959 = vmatprep.subr.bf16.mxu0 0
          %960 = vmatpush1.bf16.msra.mxu0 %v951
          %961 = vmatprep.subr.bf16.mxu0 0
          %962 = vmatpush1.bf16.msra.mxu0 0
          %963 = vmatprep.subr.bf16.mxu0 0
          %964 = vmatpush1.bf16.msra.mxu0 0
          %965 = vmatprep.subr.bf16.mxu0 0
          %966 = vmatpush1.bf16.msra.mxu0 0
          %967 = vmatprep.subr.bf16.mxu0 0
          %968 = vmatpush1.bf16.msra.mxu0 0
          %969 = vmatprep.subr.bf16.mxu0 0
          %970 = vmatpush1.bf16.msra.mxu0 0
          %971 = vmatprep.subr.bf16.mxu0 0
          %972 = vmatpush1.bf16.msra.mxu0 0
          %973 = vmatprep.subr.bf16.mxu0 0
          %974 = vmatpush1.bf16.msra.mxu0 0
          %975 = vmatprep.subr.bf16.mxu0 0
          %976 = vmatpush1.bf16.msra.mxu0 0
          %977 = vmatprep.subr.bf16.mxu0 0
          %978 = vmatpush1.bf16.msra.mxu0 0
          %979 = vmatprep.subr.bf16.mxu0 0
          %980 = vmatpush1.bf16.msra.mxu0 0
          %981 = vmatprep.subr.bf16.mxu0 0
          %982 = vmatpush1.bf16.msra.mxu0 0
          %983 = vmatprep.subr.bf16.mxu0 0
          %984 = vmatpush1.bf16.msra.mxu0 0
          %985 = vmatprep.subr.bf16.mxu0 0
          %986 = vmatpush1.bf16.msra.mxu0 0
          %987 = vmatprep.subr.bf16.mxu0 0
          %988 = vmatpush1.bf16.msra.mxu0 0
          %989 = vmatprep.mubr.bf16.mxu0 0
          %990 = vmatmul.mubr.bf16.gmra.mrb[0].mxu0 %v955
          %v991 = vpop.f32.mrb[0].mxu0
          %v992 = vadd.f32 %v937, %v991
          %v993 = vpop.f32.mrb[0].mxu0
          %v994 = vpop.f32.mrb[0].mxu0
          %v995 = vpop.f32.mrb[0].mxu0
          %996 = vdwg.mxu0
          %v997 = vmax.f32 %v992, 0.0
          %v998 = vld [vmem:[%s6] sm:$0x1]
          %v999 = vmul.f32 %v997, %v998
          %vm1000 = vcmask 122880
          %v1001 = vsel %vm1000, %v999, 0.0
          %1002 = vadd.xlane.f32.xlu0 %v1001
          %v1003 = vpop.xlane.xlu0 %1002
          %v1004 = vxor.u32 %v1003, 2147483648
          %v1005 = vmul.f32 %v1004, 1.442695
          %v1006 = vpow.pop %v1005
          %v1007 = vadd.f32 %v1006, 1.0
          %v1008 = vrcp.pop %v1007
          %v1009 = vmul.f32 1.0, %v1008
          %v1010 = vmul.f32 %v1009, %v819
          %v1011 = vsub.f32 1.0, %v1009
          %v1012 = vmul.f32 %v1011, %v872
          %v1013 = vadd.f32 %v1010, %v1012
          %v1014 = vld [vmem:[%s7] sm:$0x1]
          %v1015 = vld [vmem:[%s8] sm:$0x1]
          %v1016 = vsel %vm732, %v1013, 0.0
          %1017 = vadd.xlane.f32.xlu0 %v1016
          %v1018 = vpop.xlane.xlu0 %1017
          %v1019 = vrcp.pop 32.0
          %v1020 = vmul.f32 %v1018, %v1019
          %v1021 = vsub.f32 %v1013, %v1020
          %v1022 = vmul.f32 %v1021, %v1021
          %v1023 = vsel %vm732, %v1022, 0.0
          %1024 = vadd.xlane.f32.xlu0 %v1023
          %v1025 = vpop.xlane.xlu0 %1024
          %v1026 = vmul.f32 %v1025, %v1019
          %v1027 = vadd.f32 %v1026, 1e-05
          %v1028 = vrsqrt.pop %v1027
          %v1029 = vmul.f32 %v1021, %v1028
          %v1030 = vmul.f32 %v1029, %v1014
          %v1031 = vadd.f32 %v1030, %v1015
          %v1032 = vpack.c.bf16 %v1031, %v1031
          %v1033 = vld [vmem:[%s9] sm:$0xf]
          %v1034 = vld [vmem:[%s9 + $0x4] sm:$0xf]
          %v1035 = vld [vmem:[%s9 + $0x8] sm:$0xf]
          %v1036 = vld [vmem:[%s9 + $0xc] sm:$0xf]
          %v1041 = vunpack.c.l.b16 %v1033
          %v1042 = vunpack.c.l.b16 %v1034
          %v1043 = vunpack.c.l.b16 %v1035
          %v1044 = vunpack.c.l.b16 %v1036
          %v1045 = vpack.c.b16 %v1042, %v1041
          %v1046 = vpack.c.b16 %v1044, %v1043
          %v1050 = vsel %vm780, %v1032, 0
          %1052 = vmatprep.subr.bf16.mxu0 0
          %1053 = vmatpush1.bf16.msra.mxu0 %v1045
          %1054 = vmatprep.subr.bf16.mxu0 0
          %1055 = vmatpush1.bf16.msra.mxu0 %v1046
          %1056 = vmatprep.subr.bf16.mxu0 0
          %1057 = vmatpush1.bf16.msra.mxu0 0
          %1058 = vmatprep.subr.bf16.mxu0 0
          %1059 = vmatpush1.bf16.msra.mxu0 0
          %1060 = vmatprep.subr.bf16.mxu0 0
          %1061 = vmatpush1.bf16.msra.mxu0 0
          %1062 = vmatprep.subr.bf16.mxu0 0
          %1063 = vmatpush1.bf16.msra.mxu0 0
          %1064 = vmatprep.subr.bf16.mxu0 0
          %1065 = vmatpush1.bf16.msra.mxu0 0
          %1066 = vmatprep.subr.bf16.mxu0 0
          %1067 = vmatpush1.bf16.msra.mxu0 0
          %1068 = vmatprep.subr.bf16.mxu0 0
          %1069 = vmatpush1.bf16.msra.mxu0 0
          %1070 = vmatprep.subr.bf16.mxu0 0
          %1071 = vmatpush1.bf16.msra.mxu0 0
          %1072 = vmatprep.subr.bf16.mxu0 0
          %1073 = vmatpush1.bf16.msra.mxu0 0
          %1074 = vmatprep.subr.bf16.mxu0 0
          %1075 = vmatpush1.bf16.msra.mxu0 0
          %1076 = vmatprep.subr.bf16.mxu0 0
          %1077 = vmatpush1.bf16.msra.mxu0 0
          %1078 = vmatprep.subr.bf16.mxu0 0
          %1079 = vmatpush1.bf16.msra.mxu0 0
          %1080 = vmatprep.subr.bf16.mxu0 0
          %1081 = vmatpush1.bf16.msra.mxu0 0
          %1082 = vmatprep.subr.bf16.mxu0 0
          %1083 = vmatpush1.bf16.msra.mxu0 0
          %1084 = vmatprep.mubr.bf16.mxu0 0
          %1085 = vmatmul.mubr.bf16.gmra.mrb[0].mxu0 %v1050
          %v1086 = vpop.f32.mrb[0].mxu0
          %v1087 = vadd.f32 0.0, %v1086
          %v1088 = vpop.f32.mrb[0].mxu0
          %v1089 = vpop.f32.mrb[0].mxu0
          %v1090 = vpop.f32.mrb[0].mxu0
          %1091 = vdwg.mxu0
          %v1092 = vld [vmem:[%s10] sm:$0x1]
          %v1093 = vld [vmem:[%s11] sm:$0x1]
          %v1094 = vsel %vm732, %v1087, 0.0
          %1095 = vadd.xlane.f32.xlu0 %v1094
          %v1096 = vpop.xlane.xlu0 %1095
          %v1097 = vmul.f32 %v1096, %v1019
          %v1098 = vsub.f32 %v1087, %v1097
          %v1099 = vmul.f32 %v1098, %v1098
          %v1100 = vsel %vm732, %v1099, 0.0
          %1101 = vadd.xlane.f32.xlu0 %v1100
          %v1102 = vpop.xlane.xlu0 %1101
          %v1103 = vmul.f32 %v1102, %v1019
          %v1104 = vadd.f32 %v1103, 1e-05
          %v1105 = vrsqrt.pop %v1104
          %v1106 = vmul.f32 %v1098, %v1105
          %v1107 = vmul.f32 %v1106, %v1092
          %v1108 = vadd.f32 %v1107, %v1093
          %v1109 = vmax.f32 %v1108, 0.0
          %v1110 = vpack.c.bf16 %v1109, %v1109
          %v1111 = vld [vmem:[%s12] sm:$0xf]
          %v1112 = vld [vmem:[%s12 + $0x4] sm:$0xf]
          %v1113 = vld [vmem:[%s12 + $0x8] sm:$0xf]
          %v1114 = vld [vmem:[%s12 + $0xc] sm:$0xf]
          %v1119 = vunpack.c.l.b16 %v1111
          %v1120 = vunpack.c.l.b16 %v1112
          %v1121 = vunpack.c.l.b16 %v1113
          %v1122 = vunpack.c.l.b16 %v1114
          %v1123 = vpack.c.b16 %v1120, %v1119
          %v1124 = vpack.c.b16 %v1122, %v1121
          %v1128 = vsel %vm780, %v1110, 0
          %1130 = vmatprep.subr.bf16.mxu0 0
          %1131 = vmatpush1.bf16.msra.mxu0 %v1123
          %1132 = vmatprep.subr.bf16.mxu0 0
          %1133 = vmatpush1.bf16.msra.mxu0 %v1124
          %1134 = vmatprep.subr.bf16.mxu0 0
          %1135 = vmatpush1.bf16.msra.mxu0 0
          %1136 = vmatprep.subr.bf16.mxu0 0
          %1137 = vmatpush1.bf16.msra.mxu0 0
          %1138 = vmatprep.subr.bf16.mxu0 0
          %1139 = vmatpush1.bf16.msra.mxu0 0
          %1140 = vmatprep.subr.bf16.mxu0 0
          %1141 = vmatpush1.bf16.msra.mxu0 0
          %1142 = vmatprep.subr.bf16.mxu0 0
          %1143 = vmatpush1.bf16.msra.mxu0 0
          %1144 = vmatprep.subr.bf16.mxu0 0
          %1145 = vmatpush1.bf16.msra.mxu0 0
          %1146 = vmatprep.subr.bf16.mxu0 0
          %1147 = vmatpush1.bf16.msra.mxu0 0
          %1148 = vmatprep.subr.bf16.mxu0 0
          %1149 = vmatpush1.bf16.msra.mxu0 0
          %1150 = vmatprep.subr.bf16.mxu0 0
          %1151 = vmatpush1.bf16.msra.mxu0 0
          %1152 = vmatprep.subr.bf16.mxu0 0
          %1153 = vmatpush1.bf16.msra.mxu0 0
          %1154 = vmatprep.subr.bf16.mxu0 0
          %1155 = vmatpush1.bf16.msra.mxu0 0
          %1156 = vmatprep.subr.bf16.mxu0 0
          %1157 = vmatpush1.bf16.msra.mxu0 0
          %1158 = vmatprep.subr.bf16.mxu0 0
          %1159 = vmatpush1.bf16.msra.mxu0 0
          %1160 = vmatprep.subr.bf16.mxu0 0
          %1161 = vmatpush1.bf16.msra.mxu0 0
          %1162 = vmatprep.mubr.bf16.mxu0 0
          %1163 = vmatmul.mubr.bf16.gmra.mrb[0].mxu0 %v1128
          %v1164 = vpop.f32.mrb[0].mxu0
          %v1165 = vadd.f32 0.0, %v1164
          %v1166 = vpop.f32.mrb[0].mxu0
          %v1167 = vpop.f32.mrb[0].mxu0
          %v1168 = vpop.f32.mrb[0].mxu0
          %1169 = vdwg.mxu0
          %v1170 = vld [vmem:[%s13] sm:$0x1]
          %v1171 = vld [vmem:[%s14] sm:$0x1]
          %v1172 = vsel %vm1000, %v1165, 0.0
          %1173 = vadd.xlane.f32.xlu0 %v1172
          %v1174 = vpop.xlane.xlu0 %1173
          %v1175 = vrcp.pop 16.0
          %v1176 = vmul.f32 %v1174, %v1175
          %v1177 = vsub.f32 %v1165, %v1176
          %v1178 = vmul.f32 %v1177, %v1177
          %v1179 = vsel %vm1000, %v1178, 0.0
          %1180 = vadd.xlane.f32.xlu0 %v1179
          %v1181 = vpop.xlane.xlu0 %1180
          %v1182 = vmul.f32 %v1181, %v1175
          %v1183 = vadd.f32 %v1182, 1e-05
          %v1184 = vrsqrt.pop %v1183
          %v1185 = vmul.f32 %v1177, %v1184
          %v1186 = vmul.f32 %v1185, %v1170
          %v1187 = vadd.f32 %v1186, %v1171
          %v1188 = vmax.f32 %v1187, 0.0
          %v1189 = vld [vmem:[%s15] sm:$0x3]
          %v1190 = vmul.f32 %v1188, %v1189
          %v1191 = vsel %vm1000, %v1190, 0.0
          %1192 = vadd.xlane.f32.xlu0 %v1191
          %v1193 = vpop.xlane.xlu0 %1192
          %v1195 = vrot.slane %v1189, 1
          %v1197 = vmul.f32 %v1188, %v1195
          %v1198 = vsel %vm1000, %v1197, 0.0
          %1199 = vadd.xlane.f32.xlu0 %v1198
          %v1200 = vpop.xlane.xlu0 %1199
          %v1201 = vlaneseq
          %v1202 = vand.u32 %v1201, 127
          %v1203 = vld [vmem:[%s16] sm:$0x1]
          %vm1204 = vcmp.eq.s32.totalorder %v1202, 0
          %v1205 = vsel %vm1204, %v1193, %v1200
          %v1206 = vadd.f32 %v1203, %v1205
          %vm1207 = vcmask 8192
          %1208 = vst.msk [vmem:[%s595] sm:$0x1] %vm1207, %v1206
        $region96: #{tpu_custom_call.1} parent=87 // pred_fallthru
          _
        %s1209 = sand.u32 %s427, 1
        %s1210 = scalar_lea.sflag [#allocation5], %s1209
        %s1211 = sand.u32 %s427, 1
        %s1212 = scalar_lea.vmem [#allocation4], %s1211
        // Predicated region
        $region97: #{tpu_custom_call.1} parent=87 // pred_check
          %p1213 = pneg %p437
        $region98: #{tpu_custom_call.1} parent=87 // pred_check_branch
          %1215 = sbr.rel (%p1213) target = $region100
        $region99: #{tpu_custom_call.1} parent=87 // pred_region
          %s1217 = ssub.s32 16, 16
          %1218 = vsyncadd %s1210, %s1217
          %s1219 = smul.addr %s35, 16
          %s1220 = scalar_lea.hbm %s17, %s1219
          %s1222 = sshll.u32 %s1212, 4
          %s1223 = int_to_ptr.vmem [resolvable:$true] %s1222
          %1225 = dma.vmem_to_hbm [thread:$0]  %s1223, 16, %s1220, %s1210
        $region100: #{tpu_custom_call.1} parent=87 // pred_fallthru
          _
      $region88: #{tpu_custom_call.1} parent=5 // pred_fallthru
        _
      %p1226 = scmp.le.s32.totalorder 2, %s26
      // Predicated region
      $region101: #{tpu_custom_call.1} parent=5 // pred_check
        %p1227 = pneg %p1226
      $region102: #{tpu_custom_call.1} parent=5 // pred_check_branch
        %1229 = sbr.rel (%p1227) target = $region104
      $region103: #{tpu_custom_call.1} parent=5 // pred_region
        %s1230 = ssub.s32 %s26, 2
        // Predicated region
        $region105: #{tpu_custom_call.1} parent=103 // pred_check
          %p1231 = pneg %p443
        $region106: #{tpu_custom_call.1} parent=103 // pred_check_branch
          %1233 = sbr.rel (%p1231) target = $region108
        $region107: #{tpu_custom_call.1} parent=103 // pred_region
          %s1234 = sand.u32 %s428, 1
          %s1235 = scalar_lea.sflag [#allocation5], %s1234
          %s1236 = sand.u32 %s428, 1
          %s1237 = scalar_lea.vmem [#allocation4], %s1236
          %1238 = dma.done %s1235, 16
        $region108: #{tpu_custom_call.1} parent=103 // pred_fallthru
          _
      $region104: #{tpu_custom_call.1} parent=5 // pred_fallthru
        _
    $region6: #{tpu_custom_call.1} parent=1 // loop_footer
      %s30 = sadd.s32 1, %s26
    $region7: #{tpu_custom_call.1} parent=1 // loop_footer_branch
      %25 = sbr.rel target = $region3
    $region8: #{tpu_custom_call.1} parent=1 // loop_exit
      _
    %1239 = vsyncpa [#allocation5], 1
    %s1240 = scalar_lea.sflag [#allocation5], 1
    %1241 = vsyncpa %s1240, 1

</llo_original>
